<compile_context>
chip_gen: v7x
topology: tpu7x:2x2x1
jax: 0.10.0
libtpu: 0.0.40
codegen_flags: <defaults>
</compile_context>

<pallas_src>
import jax
import jax.numpy as jnp
from jax.experimental import pallas as pl
from jax.experimental.pallas import tpu as pltpu

F32 = jnp.float32
HID = 64                 # hid_channels
NUM_CLASSES = 3
OUT_PAD = 128            # lane-dense padded output width (>= 2*HID and >= classes)
BG_PAD = 8               # graphs-per-group rows padded to one sublane tile

# --- packed-parameter row offsets (all 8-row aligned) -----------------------
W192_ROWS = 160          # buffer 1: [160, 192]  (fused LEConv weights + biases)
OFF_WCAT0, NROWS_WCAT0 = 0, 4        # node_emb folded into LEConv-0 -> K = 4
OFF_WCAT1, NROWS_WCAT1 = 8, HID
OFF_WCAT2, NROWS_WCAT2 = 72, HID
OFF_BCAT0, OFF_BCAT1, OFF_BCAT2 = 136, 144, 152

W128_ROWS = 208          # buffer 2: [208, 128]  (robust_mlp weights + biases)
OFF_WM1 = 0              # [64, 128]
OFF_WM2 = 64             # [128, 128]  (output columns padded 3 -> 128 with zeros)
OFF_BM1 = 192
OFF_BM2 = 200


# ----------------------------------------------------------------------------
# Pallas kernel: one graph-group (128 node rows) per grid step.
# ----------------------------------------------------------------------------
def spmotif_kernel(x_ref, a_ref, p_ref, w192_ref, w128_ref, out_ref):
    A = a_ref[...]                                   # [GN, GN]
    deg = jnp.sum(A, axis=1, keepdims=True)          # [GN, 1] (XLU lane reduce)

    def leconv(h, w_off, w_rows, b_off):
        # Fused lin1|lin2|lin3 matmul, biases already rearranged so that:
        #   out = relu( A@z1 - deg*z2 + z3 )
        wcat = w192_ref[w_off:w_off + w_rows, :]     # [d_in, 192]
        bcat = w192_ref[b_off:b_off + 1, :]          # [1, 192]
        z = jnp.dot(h, wcat, preferred_element_type=F32) + bcat
        z1 = z[:, 0:HID]
        z2 = z[:, HID:2 * HID]
        z3 = z[:, 2 * HID:3 * HID]
        agg = jnp.dot(A, z1, preferred_element_type=F32) - deg * z2 + z3
        return jnp.maximum(agg, 0.0)                 # ReLU

    h = leconv(x_ref[...], OFF_WCAT0, NROWS_WCAT0, OFF_BCAT0)   # node_emb folded in
    h = leconv(h, OFF_WCAT1, NROWS_WCAT1, OFF_BCAT1)
    h = leconv(h, OFF_WCAT2, NROWS_WCAT2, OFF_BCAT2)

    # global mean pool (per-group graphs only -> disjoint output rows per grid step)
    gx = jnp.dot(p_ref[...], h, preferred_element_type=F32)     # [BG_PAD, 64]

    # robust_mlp: Linear(64,128) -> ReLU -> Linear(128,3) (padded to 128 lanes)
    wm1 = w128_ref[OFF_WM1:OFF_WM1 + HID, :]
    bm1 = w128_ref[OFF_BM1:OFF_BM1 + 1, :]
    wm2 = w128_ref[OFF_WM2:OFF_WM2 + 2 * HID, :]
    bm2 = w128_ref[OFF_BM2:OFF_BM2 + 1, :]
    hidden = jnp.maximum(jnp.dot(gx, wm1, preferred_element_type=F32) + bm1, 0.0)
    out_ref[...] = jnp.dot(hidden, wm2, preferred_element_type=F32) + bm2


def spmotif_forward(x, A_blocks, P_blocks, w192, w128):
    """x: [G*GN, F_in]; A_blocks: [G*GN, GN]; P_blocks: [G*BG_PAD, GN]."""
    GN = A_blocks.shape[1]
    num_groups = A_blocks.shape[0] // GN
    f_in = x.shape[1]

    flops_grp = (2 * GN * (f_in + 2 * HID) * 3 * HID          # fused lin matmuls
                 + 3 * 2 * GN * GN * HID                      # A @ z1 per layer
                 + 2 * BG_PAD * GN * HID                      # pooling
                 + 2 * BG_PAD * HID * 2 * HID                 # mlp layer 1
                 + 2 * BG_PAD * 2 * HID * OUT_PAD)            # mlp layer 2
    bytes_accessed = 4 * (x.size + A_blocks.size + P_blocks.size
                          + w192.size + w128.size + num_groups * BG_PAD * OUT_PAD)
    ce = pl.CostEstimate(flops=int(num_groups * flops_grp), transcendentals=0,
                         bytes_accessed=int(bytes_accessed))

    return pl.pallas_call(
        spmotif_kernel,
        out_shape=jax.ShapeDtypeStruct((num_groups * BG_PAD, OUT_PAD), F32),
        grid_spec=pltpu.PrefetchScalarGridSpec(
            num_scalar_prefetch=0,
            grid=(num_groups,),
            in_specs=[
                pl.BlockSpec((GN, f_in), lambda g: (g, 0)),        # x tile
                pl.BlockSpec((GN, GN), lambda g: (g, 0)),          # A tile
                pl.BlockSpec((BG_PAD, GN), lambda g: (g, 0)),      # P tile
                pl.BlockSpec(w192.shape, lambda g: (0, 0)),        # packed weights (resident)
                pl.BlockSpec(w128.shape, lambda g: (0, 0)),        # packed mlp weights
            ],
            out_specs=pl.BlockSpec((BG_PAD, OUT_PAD), lambda g: (g, 0)),
        ),
        compiler_params=pltpu.CompilerParams(
            dimension_semantics=("parallel",)),
        cost_estimate=ce,
    )(x, A_blocks, P_blocks, w192, w128)


# ----------------------------------------------------------------------------
# Deterministic parameter construction (shapes from the module __init__).
# ----------------------------------------------------------------------------
def _linear(key, in_dim, out_dim, bias=True, scale=0.1):
    kw, kb = jax.random.split(key)
    W = scale * jax.random.normal(kw, (in_dim, out_dim), F32)   # [in, out]
    if bias:
        b = scale * jax.random.normal(kb, (1, out_dim), F32)
        return W, b
    return (W,)


def make_params(key, hid=HID, num_classes=NUM_CLASSES):
    keys = jax.random.split(key, 16)
    p = []
    p += list(_linear(keys[0], 4, 32))                 # node_emb
    in_dims = [32, hid, hid]
    for li, d_in in enumerate(in_dims):
        k1, k2, k3 = jax.random.split(keys[1 + li], 3)
        w1, b1 = _linear(k1, d_in, hid, bias=True)     # lin1
        (w2,) = _linear(k2, d_in, hid, bias=False)     # lin2 (no bias)
        w3, b3 = _linear(k3, d_in, hid, bias=True)     # lin3
        p += [w1, b1, w2, w3, b3]
    p += list(_linear(keys[10], hid, 2 * hid))         # robust_mlp layer 1
    p += list(_linear(keys[11], 2 * hid, num_classes)) # robust_mlp layer 2
    return tuple(p)


def pack_params(params):
    """Fold node_emb into LEConv-0, fuse lin1|lin2|lin3, pack into 2 buffers."""
    (w_emb, b_emb,
     w1_0, b1_0, w2_0, w3_0, b3_0,
     w1_1, b1_1, w2_1, w3_1, b3_1,
     w1_2, b1_2, w2_2, w3_2, b3_2,
     wm1, bm1, wm2, bm2) = params

    # LEConv-0 with node_emb folded in (exact algebra), h0 = x@We + be:
    #   A@(h0@W1+b1) - deg*(h0@W2) + h0@W3 + b3
    # = A@(x@(We@W1)) - deg*(x@(We@W2) + be@W2 - be@W1 - b1) + x@(We@W3) + be@W3 + b3
    wcat0 = w_emb @ jnp.concatenate([w1_0, w2_0, w3_0], axis=1)           # [4, 192]
    c1 = b_emb @ w1_0 + b1_0
    c2 = b_emb @ w2_0
    c3 = b_emb @ w3_0 + b3_0
    bcat0 = jnp.concatenate([jnp.zeros_like(c1), c2 - c1, c3], axis=1)    # [1, 192]

    def fuse(w1, b1, w2, w3, b3):
        # A@(h@W1+b1) = A@(h@W1) + deg*b1  ->  fold b1 into the -deg*() slot
        wcat = jnp.concatenate([w1, w2, w3], axis=1)
        bcat = jnp.concatenate([jnp.zeros_like(b1), -b1, b3], axis=1)
        return wcat, bcat

    wcat1, bcat1 = fuse(w1_1, b1_1, w2_1, w3_1, b3_1)
    wcat2, bcat2 = fuse(w1_2, b1_2, w2_2, w3_2, b3_2)

    w192 = jnp.zeros((W192_ROWS, 3 * HID), F32)
    w192 = w192.at[OFF_WCAT0:OFF_WCAT0 + NROWS_WCAT0].set(wcat0)
    w192 = w192.at[OFF_WCAT1:OFF_WCAT1 + NROWS_WCAT1].set(wcat1)
    w192 = w192.at[OFF_WCAT2:OFF_WCAT2 + NROWS_WCAT2].set(wcat2)
    w192 = w192.at[OFF_BCAT0].set(bcat0[0])
    w192 = w192.at[OFF_BCAT1].set(bcat1[0])
    w192 = w192.at[OFF_BCAT2].set(bcat2[0])

    w128 = jnp.zeros((W128_ROWS, OUT_PAD), F32)
    w128 = w128.at[OFF_WM1:OFF_WM1 + HID].set(wm1)
    w128 = w128.at[OFF_WM2:OFF_WM2 + 2 * HID, :wm2.shape[1]].set(wm2)
    w128 = w128.at[OFF_BM1].set(bm1[0])
    w128 = w128.at[OFF_BM2, :bm2.shape[1]].set(bm2[0])
    return w192, w128


# ----------------------------------------------------------------------------
# Pure-JAX reference (original, unfused math) for a correctness check.
# ----------------------------------------------------------------------------
def reference_forward(x, A, deg, P, params):
    (w_emb, b_emb,
     w1_0, b1_0, w2_0, w3_0, b3_0,
     w1_1, b1_1, w2_1, w3_1, b3_1,
     w1_2, b1_2, w2_2, w3_2, b3_2,
     wm1, bm1, wm2, bm2) = params
    h = x @ w_emb + b_emb
    for (w1, b1, w2, w3, b3) in ((w1_0, b1_0, w2_0, w3_0, b3_0),
                                 (w1_1, b1_1, w2_1, w3_1, b3_1),
                                 (w1_2, b1_2, w2_2, w3_2, b3_2)):
        h = jnp.maximum(A @ (h @ w1 + b1) - deg * (h @ w2) + (h @ w3 + b3), 0.0)
    g = P @ h
    return jnp.maximum(g @ wm1 + bm1, 0.0) @ wm2 + bm2


if __name__ == "__main__":
    key = jax.random.PRNGKey(0)
    k_x, k_src, k_dst, k_w, k_params = jax.random.split(key, 5)

    NODES_PER_GRAPH = 32
    GRAPHS_PER_GROUP = 4
    NUM_GROUPS = 2
    B = GRAPHS_PER_GROUP * NUM_GROUPS          # 8 graphs
    GN = NODES_PER_GRAPH * GRAPHS_PER_GROUP    # 128 node rows per grid tile
    N = B * NODES_PER_GRAPH                    # 256 nodes total
    E_PER = 64                                 # edges per graph

    # node features [N, 4] (node_emb is Linear(4, 32))
    x = jax.random.normal(k_x, (N, 4), F32)

    # per-graph random edges (no cross-graph edges, like a PyG batched graph)
    src_l = jax.random.randint(k_src, (B, E_PER), 0, NODES_PER_GRAPH)
    dst_l = jax.random.randint(k_dst, (B, E_PER), 0, NODES_PER_GRAPH)
    ew = jax.random.uniform(k_w, (B, E_PER), F32, 0.5, 1.5)
    offs = (jnp.arange(B, dtype=jnp.int32) * NODES_PER_GRAPH)[:, None]
    src = (src_l + offs).reshape(-1)
    dst = (dst_l + offs).reshape(-1)
    w_e = ew.reshape(-1)

    # Dense adjacency A[i, j] = sum of weights of edges j -> i.
    A_full = jnp.zeros((N, N), F32).at[dst, src].add(w_e)
    deg_full = A_full.sum(axis=1, keepdims=True)

    # Mean-pool matrix P[b, n] = 1/|G_b| if batch[n] == b else 0.
    batch = jnp.repeat(jnp.arange(B, dtype=jnp.int32), NODES_PER_GRAPH)
    onehot = (batch[None, :] == jnp.arange(B)[:, None]).astype(F32)
    P_full = onehot / onehot.sum(axis=1, keepdims=True)                  # [B, N]

    # Per-group tiles: graphs 4g..4g+3 occupy nodes [g*GN, (g+1)*GN).
    A_blocks = jnp.concatenate(
        [A_full[g * GN:(g + 1) * GN, g * GN:(g + 1) * GN] for g in range(NUM_GROUPS)],
        axis=0)                                                          # [G*GN, GN]
    p_blocks = []
    for g in range(NUM_GROUPS):
        pb = P_full[g * GRAPHS_PER_GROUP:(g + 1) * GRAPHS_PER_GROUP,
                    g * GN:(g + 1) * GN]                                 # [4, 128]
        pb = jnp.concatenate(
            [pb, jnp.zeros((BG_PAD - GRAPHS_PER_GROUP, GN), F32)], axis=0)
        p_blocks.append(pb)
    P_blocks = jnp.concatenate(p_blocks, axis=0)                         # [G*8, 128]

    params = make_params(k_params)
    w192, w128 = pack_params(params)

    out_pad = spmotif_forward(x, A_blocks, P_blocks, w192, w128)
    out_pad = jax.block_until_ready(out_pad)
    out = out_pad.reshape(NUM_GROUPS, BG_PAD, OUT_PAD)[:, :GRAPHS_PER_GROUP, :NUM_CLASSES]
    out = out.reshape(B, NUM_CLASSES)

    ref = reference_forward(x, A_full, deg_full, P_full, params)
    assert out.shape == (B, NUM_CLASSES)
    assert jnp.allclose(out, ref, atol=1e-3, rtol=1e-3), (out, ref)

    print("KERNEL_OK")
</pallas_src>

<mosaic_0001>
module attributes {stable_mosaic.version = 11 : i64} {
  func.func @spmotif_kernel(%arg0: i32, %arg1: memref<128x4xf32, #tpu.memory_space<vmem>>, %arg2: memref<128x128xf32, #tpu.memory_space<vmem>>, %arg3: memref<8x128xf32, #tpu.memory_space<vmem>>, %arg4: memref<160x192xf32, #tpu.memory_space<vmem>>, %arg5: memref<208x128xf32, #tpu.memory_space<vmem>>, %arg6: memref<8x128xf32, #tpu.memory_space<vmem>>) attributes {dimension_semantics = [#tpu.dimension_semantics<parallel>], iteration_bounds = array<i64: 2>, scalar_prefetch = 0 : i64, scratch_operands = 0 : i64, tpu.core_type = #tpu.core_type<tc>, window_params = [{transform_indices = @transform_0, window_bounds = array<i64: 128, 4>}, {transform_indices = @transform_1, window_bounds = array<i64: 128, 128>}, {transform_indices = @transform_2, window_bounds = array<i64: 8, 128>}, {pipeline_mode = #tpu.pipeline_mode<synchronous>, transform_indices = @transform_3, window_bounds = array<i64: 160, 192>}, {pipeline_mode = #tpu.pipeline_mode<synchronous>, transform_indices = @transform_4, window_bounds = array<i64: 208, 128>}, {transform_indices = @transform_5, window_bounds = array<i64: 8, 128>}]} {
    %c0 = arith.constant 0 : index
    %c0_0 = arith.constant 0 : index
    %0 = vector.load %arg2[%c0, %c0_0] : memref<128x128xf32, #tpu.memory_space<vmem>>, vector<128x128xf32>
    %cst = arith.constant dense<0.000000e+00> : vector<128xf32>
    %1 = vector.multi_reduction <add>, %0, %cst [1] : vector<128x128xf32> to vector<128xf32>
    %2 = vector.shape_cast %1 : vector<128xf32> to vector<128x1xf32>
    %c0_1 = arith.constant 0 : index
    %c0_2 = arith.constant 0 : index
    %3 = vector.load %arg1[%c0_1, %c0_2] : memref<128x4xf32, #tpu.memory_space<vmem>>, vector<128x4xf32>
    %c0_3 = arith.constant 0 : index
    %c0_4 = arith.constant 0 : index
    %4 = vector.load %arg4[%c0_3, %c0_4] : memref<160x192xf32, #tpu.memory_space<vmem>>, vector<4x192xf32>
    %c136 = arith.constant 136 : index
    %c0_5 = arith.constant 0 : index
    %5 = vector.load %arg4[%c136, %c0_5] : memref<160x192xf32, #tpu.memory_space<vmem>>, vector<1x192xf32>
    %cst_6 = arith.constant dense<0.000000e+00> : vector<128x192xf32>
    %6 = tpu.matmul %3, %4, %cst_6 {dimension_numbers = #tpu.dot_dimension_numbers<[1], [0], [0], [1], [0, 0, 1, 1], [], []>} : vector<128x4xf32>, vector<4x192xf32>, vector<128x192xf32> -> vector<128x192xf32>
    %7 = vector.broadcast %5 : vector<1x192xf32> to vector<128x192xf32>
    %8 = arith.addf %6, %7 : vector<128x192xf32>
    %9 = vector.extract_strided_slice %8 {offsets = [0, 0], sizes = [128, 64], strides = [1, 1]} : vector<128x192xf32> to vector<128x64xf32>
    %10 = vector.extract_strided_slice %8 {offsets = [0, 64], sizes = [128, 64], strides = [1, 1]} : vector<128x192xf32> to vector<128x64xf32>
    %11 = vector.extract_strided_slice %8 {offsets = [0, 128], sizes = [128, 64], strides = [1, 1]} : vector<128x192xf32> to vector<128x64xf32>
    %cst_7 = arith.constant dense<0.000000e+00> : vector<128x64xf32>
    %12 = tpu.matmul %0, %9, %cst_7 {dimension_numbers = #tpu.dot_dimension_numbers<[1], [0], [0], [1], [0, 0, 1, 1], [], []>} : vector<128x128xf32>, vector<128x64xf32>, vector<128x64xf32> -> vector<128x64xf32>
    %13 = vector.broadcast %2 : vector<128x1xf32> to vector<128x64xf32>
    %14 = arith.mulf %13, %10 : vector<128x64xf32>
    %15 = arith.subf %12, %14 : vector<128x64xf32>
    %16 = arith.addf %15, %11 : vector<128x64xf32>
    %cst_8 = arith.constant 0.000000e+00 : f32
    %17 = vector.broadcast %cst_8 : f32 to vector<128x64xf32>
    %18 = arith.maximumf %16, %17 : vector<128x64xf32>
    %c8 = arith.constant 8 : index
    %c0_9 = arith.constant 0 : index
    %19 = vector.load %arg4[%c8, %c0_9] : memref<160x192xf32, #tpu.memory_space<vmem>>, vector<64x192xf32>
    %c144 = arith.constant 144 : index
    %c0_10 = arith.constant 0 : index
    %20 = vector.load %arg4[%c144, %c0_10] : memref<160x192xf32, #tpu.memory_space<vmem>>, vector<1x192xf32>
    %cst_11 = arith.constant dense<0.000000e+00> : vector<128x192xf32>
    %21 = tpu.matmul %18, %19, %cst_11 {dimension_numbers = #tpu.dot_dimension_numbers<[1], [0], [0], [1], [0, 0, 1, 1], [], []>} : vector<128x64xf32>, vector<64x192xf32>, vector<128x192xf32> -> vector<128x192xf32>
    %22 = vector.broadcast %20 : vector<1x192xf32> to vector<128x192xf32>
    %23 = arith.addf %21, %22 : vector<128x192xf32>
    %24 = vector.extract_strided_slice %23 {offsets = [0, 0], sizes = [128, 64], strides = [1, 1]} : vector<128x192xf32> to vector<128x64xf32>
    %25 = vector.extract_strided_slice %23 {offsets = [0, 64], sizes = [128, 64], strides = [1, 1]} : vector<128x192xf32> to vector<128x64xf32>
    %26 = vector.extract_strided_slice %23 {offsets = [0, 128], sizes = [128, 64], strides = [1, 1]} : vector<128x192xf32> to vector<128x64xf32>
    %cst_12 = arith.constant dense<0.000000e+00> : vector<128x64xf32>
    %27 = tpu.matmul %0, %24, %cst_12 {dimension_numbers = #tpu.dot_dimension_numbers<[1], [0], [0], [1], [0, 0, 1, 1], [], []>} : vector<128x128xf32>, vector<128x64xf32>, vector<128x64xf32> -> vector<128x64xf32>
    %28 = vector.broadcast %2 : vector<128x1xf32> to vector<128x64xf32>
    %29 = arith.mulf %28, %25 : vector<128x64xf32>
    %30 = arith.subf %27, %29 : vector<128x64xf32>
    %31 = arith.addf %30, %26 : vector<128x64xf32>
    %cst_13 = arith.constant 0.000000e+00 : f32
    %32 = vector.broadcast %cst_13 : f32 to vector<128x64xf32>
    %33 = arith.maximumf %31, %32 : vector<128x64xf32>
    %c72 = arith.constant 72 : index
    %c0_14 = arith.constant 0 : index
    %34 = vector.load %arg4[%c72, %c0_14] : memref<160x192xf32, #tpu.memory_space<vmem>>, vector<64x192xf32>
    %c152 = arith.constant 152 : index
    %c0_15 = arith.constant 0 : index
    %35 = vector.load %arg4[%c152, %c0_15] : memref<160x192xf32, #tpu.memory_space<vmem>>, vector<1x192xf32>
    %cst_16 = arith.constant dense<0.000000e+00> : vector<128x192xf32>
    %36 = tpu.matmul %33, %34, %cst_16 {dimension_numbers = #tpu.dot_dimension_numbers<[1], [0], [0], [1], [0, 0, 1, 1], [], []>} : vector<128x64xf32>, vector<64x192xf32>, vector<128x192xf32> -> vector<128x192xf32>
    %37 = vector.broadcast %35 : vector<1x192xf32> to vector<128x192xf32>
    %38 = arith.addf %36, %37 : vector<128x192xf32>
    %39 = vector.extract_strided_slice %38 {offsets = [0, 0], sizes = [128, 64], strides = [1, 1]} : vector<128x192xf32> to vector<128x64xf32>
    %40 = vector.extract_strided_slice %38 {offsets = [0, 64], sizes = [128, 64], strides = [1, 1]} : vector<128x192xf32> to vector<128x64xf32>
    %41 = vector.extract_strided_slice %38 {offsets = [0, 128], sizes = [128, 64], strides = [1, 1]} : vector<128x192xf32> to vector<128x64xf32>
    %cst_17 = arith.constant dense<0.000000e+00> : vector<128x64xf32>
    %42 = tpu.matmul %0, %39, %cst_17 {dimension_numbers = #tpu.dot_dimension_numbers<[1], [0], [0], [1], [0, 0, 1, 1], [], []>} : vector<128x128xf32>, vector<128x64xf32>, vector<128x64xf32> -> vector<128x64xf32>
    %43 = vector.broadcast %2 : vector<128x1xf32> to vector<128x64xf32>
    %44 = arith.mulf %43, %40 : vector<128x64xf32>
    %45 = arith.subf %42, %44 : vector<128x64xf32>
    %46 = arith.addf %45, %41 : vector<128x64xf32>
    %cst_18 = arith.constant 0.000000e+00 : f32
    %47 = vector.broadcast %cst_18 : f32 to vector<128x64xf32>
    %48 = arith.maximumf %46, %47 : vector<128x64xf32>
    %c0_19 = arith.constant 0 : index
    %c0_20 = arith.constant 0 : index
    %49 = vector.load %arg3[%c0_19, %c0_20] : memref<8x128xf32, #tpu.memory_space<vmem>>, vector<8x128xf32>
    %cst_21 = arith.constant dense<0.000000e+00> : vector<8x64xf32>
    %50 = tpu.matmul %49, %48, %cst_21 {dimension_numbers = #tpu.dot_dimension_numbers<[1], [0], [0], [1], [0, 0, 1, 1], [], []>} : vector<8x128xf32>, vector<128x64xf32>, vector<8x64xf32> -> vector<8x64xf32>
    %c0_22 = arith.constant 0 : index
    %c0_23 = arith.constant 0 : index
    %51 = vector.load %arg5[%c0_22, %c0_23] : memref<208x128xf32, #tpu.memory_space<vmem>>, vector<64x128xf32>
    %c192 = arith.constant 192 : index
    %c0_24 = arith.constant 0 : index
    %52 = vector.load %arg5[%c192, %c0_24] : memref<208x128xf32, #tpu.memory_space<vmem>>, vector<1x128xf32>
    %c64 = arith.constant 64 : index
    %c0_25 = arith.constant 0 : index
    %53 = vector.load %arg5[%c64, %c0_25] : memref<208x128xf32, #tpu.memory_space<vmem>>, vector<128x128xf32>
    %c200 = arith.constant 200 : index
    %c0_26 = arith.constant 0 : index
    %54 = vector.load %arg5[%c200, %c0_26] : memref<208x128xf32, #tpu.memory_space<vmem>>, vector<1x128xf32>
    %cst_27 = arith.constant dense<0.000000e+00> : vector<8x128xf32>
    %55 = tpu.matmul %50, %51, %cst_27 {dimension_numbers = #tpu.dot_dimension_numbers<[1], [0], [0], [1], [0, 0, 1, 1], [], []>} : vector<8x64xf32>, vector<64x128xf32>, vector<8x128xf32> -> vector<8x128xf32>
    %56 = vector.broadcast %52 : vector<1x128xf32> to vector<8x128xf32>
    %57 = arith.addf %55, %56 : vector<8x128xf32>
    %cst_28 = arith.constant 0.000000e+00 : f32
    %58 = vector.broadcast %cst_28 : f32 to vector<8x128xf32>
    %59 = arith.maximumf %57, %58 : vector<8x128xf32>
    %cst_29 = arith.constant dense<0.000000e+00> : vector<8x128xf32>
    %60 = tpu.matmul %59, %53, %cst_29 {dimension_numbers = #tpu.dot_dimension_numbers<[1], [0], [0], [1], [0, 0, 1, 1], [], []>} : vector<8x128xf32>, vector<128x128xf32>, vector<8x128xf32> -> vector<8x128xf32>
    %61 = vector.broadcast %54 : vector<1x128xf32> to vector<8x128xf32>
    %62 = arith.addf %60, %61 : vector<8x128xf32>
    %c0_30 = arith.constant 0 : index
    %c0_31 = arith.constant 0 : index
    %63 = vector.load %arg6[%c0_30, %c0_31] : memref<8x128xf32, #tpu.memory_space<vmem>>, vector<8x128xf32>
    tpu.vector_store %arg6[%c0_30, %c0_31], %62 {strides = array<i32>} : memref<8x128xf32, #tpu.memory_space<vmem>>, vector<8x128xf32>,
    return
  }
  func.func @transform_0(%arg0: i32) -> (i32, i32) {
    %c0_i32 = arith.constant 0 : i32
    %c0_i32_0 = arith.constant 0 : i32
    return %arg0, %c0_i32 : i32, i32
  }
  func.func @transform_1(%arg0: i32) -> (i32, i32) {
    %c0_i32 = arith.constant 0 : i32
    %c0_i32_0 = arith.constant 0 : i32
    return %arg0, %c0_i32 : i32, i32
  }
  func.func @transform_2(%arg0: i32) -> (i32, i32) {
    %c0_i32 = arith.constant 0 : i32
    %c0_i32_0 = arith.constant 0 : i32
    return %arg0, %c0_i32 : i32, i32
  }
  func.func @transform_3(%arg0: i32) -> (i32, i32) {
    %c0_i32 = arith.constant 0 : i32
    %c0_i32_0 = arith.constant 0 : i32
    %c0_i32_1 = arith.constant 0 : i32
    return %c0_i32, %c0_i32_0 : i32, i32
  }
  func.func @transform_4(%arg0: i32) -> (i32, i32) {
    %c0_i32 = arith.constant 0 : i32
    %c0_i32_0 = arith.constant 0 : i32
    %c0_i32_1 = arith.constant 0 : i32
    return %c0_i32, %c0_i32_0 : i32, i32
  }
  func.func @transform_5(%arg0: i32) -> (i32, i32) {
    %c0_i32 = arith.constant 0 : i32
    %c0_i32_0 = arith.constant 0 : i32
    return %arg0, %c0_i32 : i32, i32
  }
}

</mosaic_0001>

<llo_original>
// kernel: tpu_custom_call.1
$region0: #{tpu_custom_call.1}
  #allocation0 [shape = 'u32[]', space=smem, size = 0x4, offset = 0x4, fixed_abs, tag = 'smem constant byte address 0x4 - core index']
  #allocation1 [shape = 'u32[144,128]{1,0:T(1,128)}', space=vmem, size = 0x12000, scoped, tag = 'internal scratch']
  %s0 = inlined_call_operand.vmem [shape: f32[256,4], index: 0, kind: input, shape index: {}]
  %s1 = inlined_call_operand.vmem [shape: f32[256,128], index: 1, kind: input, shape index: {}]
  %s2 = inlined_call_operand.hbm [shape: f32[16,128], index: 2, kind: input, shape index: {}]
  %s3 = inlined_call_operand.hbm [shape: f32[160,192], index: 3, kind: input, shape index: {}]
  %s4 = inlined_call_operand.hbm [shape: f32[208,128], index: 4, kind: input, shape index: {}]
  %s5 = inlined_call_operand.hbm [shape: f32[16,128], index: 5, kind: output, shape index: {}]
  %s6 = sld [smem:[#allocation0]]
  $region65: #{tpu_custom_call.1} parent=0
    _
  %s8 = ssub.s32 1, %s6
  %s9 = scalar_select 0, %s8, %s6
  $region1: #{tpu_custom_call.1} parent=0
    #allocation2 [shape = 'u8[8192]{0}', space=vmem, size = 0x2000, scoped, tag = 'input window, operand 2']
    #allocation3 [shape = 's32[2]{0}', space=sflag, size = 0x8, scoped, tag = 'scoped memory for tpu_custom_call.1']
    #allocation4 [shape = 's32[2]{0}', space=sflag, size = 0x8, scoped, tag = 'scoped memory for tpu_custom_call.1']
    #allocation5 [shape = 'u8[163840]{0}', space=vmem, size = 0x28000, scoped, tag = 'input window, operand 3, single buffered']
    #allocation6 [shape = 's32[1]{0}', space=sflag, size = 0x4, scoped, tag = 'scoped memory for tpu_custom_call.1']
    #allocation7 [shape = 'u8[106496]{0}', space=vmem, size = 0x1a000, scoped, tag = 'input window, operand 4, single buffered']
    #allocation8 [shape = 'u8[8192]{0}', space=vmem, size = 0x2000, scoped, tag = 'output window, operand 0']
    %10 = vsyncpa [#allocation3], 0
    %s11 = scalar_lea.sflag [#allocation3], 1
    %12 = vsyncpa %s11, 0
    %13 = vsyncpa [#allocation6], 0
    %14 = vsyncpa [#allocation4], 0
    %s15 = scalar_lea.sflag [#allocation4], 1
    %16 = vsyncpa %s15, 0
    loop: start=0, step=1, limit=4
    $region2: #{tpu_custom_call.1} parent=1 // loop_pre_header
      _
    $region3: #{tpu_custom_call.1} parent=1 // loop_header
      %s18 = sphi 0, %s22
      %p19 = scmp.ge.s32.totalorder %s18, 4
      %s28 = sphi 0, %s30
      %s31 = sphi 0, %s28
      %s32 = sphi 0, %s31
      %s48 = sphi 0, %s32
      %s54 = sphi 0, %s56
      %s57 = sphi 0, %s54
      %s58 = sphi 0, %s57
      %s74 = sphi 0, %s58
      %s80 = sphi 0, %s82
      %s83 = sphi 0, %s80
      %s84 = sphi 0, %s83
      %s100 = sphi 0, %s84
      %s104 = sphi 0, %s104
      %s106 = sphi 0, %s104
      %s107 = sphi 0, %s106
      %s121 = sphi 0, %s107
      %s125 = sphi 0, %s125
      %s127 = sphi 0, %s125
      %s128 = sphi 0, %s127
      %s142 = sphi 0, %s128
      %s148 = sphi 0, %s150
      %s151 = sphi 0, %s148
      %s152 = sphi 0, %s151
      %s168 = sphi 0, %s152
    $region4: #{tpu_custom_call.1} parent=1 // loop_header_branch
      %21 = sbr.rel (%p19) target = $region8
    $region5: #{tpu_custom_call.1} parent=1 // loop_body
      %s23 = ssub.s32 %s18, 1
      %s24 = ssub.s32 %s18, 2
      %s25 = sadd.s32 %s18, 1
      %s26 = ssub.s32 %s18, %s25
      %p27 = scmp.eq.s32.totalorder %s26, 0
      %s29 = sadd.s32 %s28, 1
      %s30 = scalar_select %p27, %s28, %s29
      %p33 = pneg %p27
      %p34 = scmp.eq.s32.totalorder %s18, 1
      %p35 = por %p33, %p34
      %p36 = scmp.ne.s32.totalorder %s28, %s31
      %p37 = scmp.eq.s32.totalorder %s18, 0
      %p38 = por %p36, %p37
      %p39 = scmp.ne.s32.totalorder %s28, %s31
      %p40 = scmp.eq.s32.totalorder %s23, 1
      %p41 = por %p39, %p40
      %p42 = scmp.ne.s32.totalorder %s31, %s32
      %p43 = scmp.eq.s32.totalorder %s23, 0
      %p44 = por %p42, %p43
      %p45 = scmp.ne.s32.totalorder %s31, %s32
      %p46 = scmp.eq.s32.totalorder %s24, 1
      %p47 = por %p45, %p46
      %p49 = scmp.ne.s32.totalorder %s32, %s48
      %p50 = scmp.eq.s32.totalorder %s24, 0
      %p51 = por %p49, %p50
      %s52 = ssub.s32 %s18, %s25
      %p53 = scmp.eq.s32.totalorder %s52, 0
      %s55 = sadd.s32 %s54, 1
      %s56 = scalar_select %p53, %s54, %s55
      %p59 = pneg %p53
      %p60 = scmp.eq.s32.totalorder %s18, 1
      %p61 = por %p59, %p60
      %p62 = scmp.ne.s32.totalorder %s54, %s57
      %p63 = scmp.eq.s32.totalorder %s18, 0
      %p64 = por %p62, %p63
      %p65 = scmp.ne.s32.totalorder %s54, %s57
      %p66 = scmp.eq.s32.totalorder %s23, 1
      %p67 = por %p65, %p66
      %p68 = scmp.ne.s32.totalorder %s57, %s58
      %p69 = scmp.eq.s32.totalorder %s23, 0
      %p70 = por %p68, %p69
      %p71 = scmp.ne.s32.totalorder %s57, %s58
      %p72 = scmp.eq.s32.totalorder %s24, 1
      %p73 = por %p71, %p72
      %p75 = scmp.ne.s32.totalorder %s58, %s74
      %p76 = scmp.eq.s32.totalorder %s24, 0
      %p77 = por %p75, %p76
      %s78 = ssub.s32 %s18, %s25
      %p79 = scmp.eq.s32.totalorder %s78, 0
      %s81 = sadd.s32 %s80, 1
      %s82 = scalar_select %p79, %s80, %s81
      %p85 = pneg %p79
      %p86 = scmp.eq.s32.totalorder %s18, 1
      %p87 = por %p85, %p86
      %p88 = scmp.ne.s32.totalorder %s80, %s83
      %p89 = scmp.eq.s32.totalorder %s18, 0
      %p90 = por %p88, %p89
      %p91 = scmp.ne.s32.totalorder %s80, %s83
      %p92 = scmp.eq.s32.totalorder %s23, 1
      %p93 = por %p91, %p92
      %p94 = scmp.ne.s32.totalorder %s83, %s84
      %p95 = scmp.eq.s32.totalorder %s23, 0
      %p96 = por %p94, %p95
      %p97 = scmp.ne.s32.totalorder %s83, %s84
      %p98 = scmp.eq.s32.totalorder %s24, 1
      %p99 = por %p97, %p98
      %p101 = scmp.ne.s32.totalorder %s84, %s100
      %p102 = scmp.eq.s32.totalorder %s24, 0
      %p103 = por %p101, %p102
      %s105 = sadd.s32 %s104, 1
      %p108 = scmp.eq.s32.totalorder %s18, 1
      %p109 = scmp.ne.s32.totalorder %s104, %s106
      %p110 = scmp.eq.s32.totalorder %s18, 0
      %p111 = por %p109, %p110
      %p112 = scmp.ne.s32.totalorder %s104, %s106
      %p113 = scmp.eq.s32.totalorder %s23, 1
      %p114 = por %p112, %p113
      %p115 = scmp.ne.s32.totalorder %s106, %s107
      %p116 = scmp.eq.s32.totalorder %s23, 0
      %p117 = por %p115, %p116
      %p118 = scmp.ne.s32.totalorder %s106, %s107
      %p119 = scmp.eq.s32.totalorder %s24, 1
      %p120 = por %p118, %p119
      %p122 = scmp.ne.s32.totalorder %s107, %s121
      %p123 = scmp.eq.s32.totalorder %s24, 0
      %p124 = por %p122, %p123
      %s126 = sadd.s32 %s125, 1
      %p129 = scmp.eq.s32.totalorder %s18, 1
      %p130 = scmp.ne.s32.totalorder %s125, %s127
      %p131 = scmp.eq.s32.totalorder %s18, 0
      %p132 = por %p130, %p131
      %p133 = scmp.ne.s32.totalorder %s125, %s127
      %p134 = scmp.eq.s32.totalorder %s23, 1
      %p135 = por %p133, %p134
      %p136 = scmp.ne.s32.totalorder %s127, %s128
      %p137 = scmp.eq.s32.totalorder %s23, 0
      %p138 = por %p136, %p137
      %p139 = scmp.ne.s32.totalorder %s127, %s128
      %p140 = scmp.eq.s32.totalorder %s24, 1
      %p141 = por %p139, %p140
      %p143 = scmp.ne.s32.totalorder %s128, %s142
      %p144 = scmp.eq.s32.totalorder %s24, 0
      %p145 = por %p143, %p144
      %s146 = ssub.s32 %s18, %s25
      %p147 = scmp.eq.s32.totalorder %s146, 0
      %s149 = sadd.s32 %s148, 1
      %s150 = scalar_select %p147, %s148, %s149
      %p153 = pneg %p147
      %p154 = scmp.eq.s32.totalorder %s18, 1
      %p155 = por %p153, %p154
      %p156 = scmp.ne.s32.totalorder %s148, %s151
      %p157 = scmp.eq.s32.totalorder %s18, 0
      %p158 = por %p156, %p157
      %p159 = scmp.ne.s32.totalorder %s148, %s151
      %p160 = scmp.eq.s32.totalorder %s23, 1
      %p161 = por %p159, %p160
      %p162 = scmp.ne.s32.totalorder %s151, %s152
      %p163 = scmp.eq.s32.totalorder %s23, 0
      %p164 = por %p162, %p163
      %p165 = scmp.ne.s32.totalorder %s151, %s152
      %p166 = scmp.eq.s32.totalorder %s24, 1
      %p167 = por %p165, %p166
      %p169 = scmp.ne.s32.totalorder %s152, %s168
      %p170 = scmp.eq.s32.totalorder %s24, 0
      %p171 = por %p169, %p170
      %p172 = scmp.le.s32.totalorder 1, %s18
      %p173 = scmp.lt.s32.totalorder %s18, 3
      %p174 = pnand %p172, %p173
      %p175 = pneg %p174
      // Predicated region
      $region9: #{tpu_custom_call.1} parent=5 // pred_check
        _
      $region10: #{tpu_custom_call.1} parent=5 // pred_check_branch
        %177 = sbr.rel (%p174) target = $region12
      $region11: #{tpu_custom_call.1} parent=5 // pred_region
        %s178 = ssub.s32 %s18, 1
        // Predicated region
        $region13: #{tpu_custom_call.1} parent=11 // pred_check
          %p179 = pneg %p117
        $region14: #{tpu_custom_call.1} parent=11 // pred_check_branch
          %181 = sbr.rel (%p179) target = $region16
        $region15: #{tpu_custom_call.1} parent=11 // pred_region
          %s183 = ssub.s32 5120, 5120
          %184 = vsyncadd [#allocation6], %s183
          %s185 = sshll.u32 [#allocation5], 4
          %s186 = int_to_ptr.vmem [resolvable:$true] %s185
          %191 = dma.hbm_to_vmem [thread:$0]  %s3, 5120, %s186, [#allocation6], 256, 256, 16
        $region16: #{tpu_custom_call.1} parent=11 // pred_fallthru
          _
        // Predicated region
        $region17: #{tpu_custom_call.1} parent=11 // pred_check
          %p192 = pneg %p138
        $region18: #{tpu_custom_call.1} parent=11 // pred_check_branch
          %194 = sbr.rel (%p192) target = $region20
        $region19: #{tpu_custom_call.1} parent=11 // pred_region
          %s196 = ssub.s32 3328, 3328
          %197 = vsyncadd [#allocation6], %s196
          %s198 = sshll.u32 [#allocation7], 4
          %s199 = int_to_ptr.vmem [resolvable:$true] %s198
          %204 = dma.hbm_to_vmem [thread:$0]  %s4, 3328, %s199, [#allocation6], 128, 128, 8
        $region20: #{tpu_custom_call.1} parent=11 // pred_fallthru
          _
      $region12: #{tpu_custom_call.1} parent=5 // pred_fallthru
        _
      %p205 = scmp.lt.s32.totalorder %s18, 2
      // Predicated region
      $region21: #{tpu_custom_call.1} parent=5 // pred_check
        %p206 = pneg %p205
      $region22: #{tpu_custom_call.1} parent=5 // pred_check_branch
        %208 = sbr.rel (%p206) target = $region24
      $region23: #{tpu_custom_call.1} parent=5 // pred_region
        // Predicated region
        $region25: #{tpu_custom_call.1} parent=23 // pred_check
          %p209 = pneg %p38
        $region26: #{tpu_custom_call.1} parent=23 // pred_check_branch
          %211 = sbr.rel (%p209) target = $region28
        $region27: #{tpu_custom_call.1} parent=23 // pred_region
          %s212 = smul.u32 16, %s18
          %p213 = scmp.lt.s32.totalorder %s212, 31
          %s214 = scalar_select %p213, %s212, 31
          %s215 = smul.addr %s214, 8
          %s216 = scalar_lea.vmem %s0, %s215
          %s217 = smul.u32 16, %s18
        $region28: #{tpu_custom_call.1} parent=23 // pred_fallthru
          _
        // Predicated region
        $region29: #{tpu_custom_call.1} parent=23 // pred_check
          %p218 = pneg %p64
        $region30: #{tpu_custom_call.1} parent=23 // pred_check_branch
          %220 = sbr.rel (%p218) target = $region32
        $region31: #{tpu_custom_call.1} parent=23 // pred_region
          %s221 = smul.u32 16, %s18
          %p222 = scmp.lt.s32.totalorder %s221, 31
          %s223 = scalar_select %p222, %s221, 31
          %s224 = smul.addr %s223, 8
          %s225 = scalar_lea.vmem %s1, %s224
          %s226 = smul.u32 16, %s18
        $region32: #{tpu_custom_call.1} parent=23 // pred_fallthru
          _
        // Predicated region
        $region33: #{tpu_custom_call.1} parent=23 // pred_check
          %p227 = pneg %p90
        $region34: #{tpu_custom_call.1} parent=23 // pred_check_branch
          %229 = sbr.rel (%p227) target = $region36
        $region35: #{tpu_custom_call.1} parent=23 // pred_region
          %s230 = sand.u32 %s80, 1
          %s231 = scalar_lea.sflag [#allocation3], %s230
          %s232 = sand.u32 %s80, 1
          %s233 = smul.addr %s232, 8
          %s234 = scalar_lea.vmem [#allocation2], %s233
          %s236 = ssub.s32 128, 128
          %237 = vsyncadd %s231, %s236
          %s238 = smul.addr %s18, 128
          %s239 = scalar_lea.hbm %s2, %s238
          %s241 = sshll.u32 %s234, 4
          %s242 = int_to_ptr.vmem [resolvable:$true] %s241
          %244 = dma.hbm_to_vmem [thread:$0]  %s239, 128, %s242, %s231
        $region36: #{tpu_custom_call.1} parent=23 // pred_fallthru
          _
      $region24: #{tpu_custom_call.1} parent=5 // pred_fallthru
        _
      %p245 = scmp.le.s32.totalorder 1, %s18
      %p246 = scmp.lt.s32.totalorder %s18, 3
      %p247 = pnand %p245, %p246
      %p248 = pneg %p247
      // Predicated region
      $region37: #{tpu_custom_call.1} parent=5 // pred_check
        _
      $region38: #{tpu_custom_call.1} parent=5 // pred_check_branch
        %250 = sbr.rel (%p247) target = $region40
      $region39: #{tpu_custom_call.1} parent=5 // pred_region
        %s251 = ssub.s32 %s18, 1
        %s252 = sand.u32 %s83, 1
        %s253 = scalar_lea.sflag [#allocation3], %s252
        %s254 = sand.u32 %s83, 1
        %s255 = smul.addr %s254, 8
        %s256 = scalar_lea.vmem [#allocation2], %s255
        // Predicated region
        $region41: #{tpu_custom_call.1} parent=39 // pred_check
          %p257 = pneg %p96
        $region42: #{tpu_custom_call.1} parent=39 // pred_check_branch
          %259 = sbr.rel (%p257) target = $region44
        $region43: #{tpu_custom_call.1} parent=39 // pred_region
          %260 = dma.done %s253, 128
        $region44: #{tpu_custom_call.1} parent=39 // pred_fallthru
          _
        // Predicated region
        $region45: #{tpu_custom_call.1} parent=39 // pred_check
          %p261 = pneg %p117
        $region46: #{tpu_custom_call.1} parent=39 // pred_check_branch
          %263 = sbr.rel (%p261) target = $region48
        $region47: #{tpu_custom_call.1} parent=39 // pred_region
          %264 = dma.done [#allocation6], 5120
        $region48: #{tpu_custom_call.1} parent=39 // pred_fallthru
          _
        // Predicated region
        $region49: #{tpu_custom_call.1} parent=39 // pred_check
          %p265 = pneg %p138
        $region50: #{tpu_custom_call.1} parent=39 // pred_check_branch
          %267 = sbr.rel (%p265) target = $region52
        $region51: #{tpu_custom_call.1} parent=39 // pred_region
          %268 = dma.done [#allocation6], 3328
        $region52: #{tpu_custom_call.1} parent=39 // pred_fallthru
          _
        %s269 = smul.u32 16, %s23
        %p270 = scmp.lt.s32.totalorder %s269, 31
        %s271 = scalar_select %p270, %s269, 31
        %s272 = smul.addr %s271, 8
        %s273 = scalar_lea.vmem %s0, %s272
        %p274 = pneg %p44
        %p275 = pneg %p41
        %s276 = smul.u32 16, %s23
        %p277 = scmp.lt.s32.totalorder %s276, 31
        %s278 = scalar_select %p277, %s276, 31
        %s279 = smul.addr %s278, 8
        %s280 = scalar_lea.vmem %s1, %s279
        %p281 = pneg %p70
        %p282 = pneg %p67
        %s283 = sand.u32 %s83, 1
        %s284 = scalar_lea.sflag [#allocation3], %s283
        %s285 = sand.u32 %s83, 1
        %s286 = smul.addr %s285, 8
        %s287 = scalar_lea.vmem [#allocation2], %s286
        %p288 = pneg %p96
        %p289 = pneg %p93
        %p290 = pneg %p117
        %p291 = pneg %p114
        %p292 = pneg %p138
        %p293 = pneg %p135
        %p294 = pneg %p164
        %p295 = pneg %p161
        %s296 = sand.u32 %s151, 1
        %s297 = scalar_lea.sflag [#allocation4], %s296
        %s298 = sand.u32 %s151, 1
        %s299 = smul.addr %s298, 8
        %s300 = scalar_lea.vmem [#allocation8], %s299
        %s301 = smul.u32 16, %s23
        %p302 = scmp.lt.s32.totalorder %s301, 31
        %s303 = scalar_select %p302, %s301, 31
        %s304 = smul.addr %s303, 8
        %s305 = scalar_lea.vmem %s0, %s304
        %s306 = smul.u32 16, %s23
        %s307 = smul.u32 16, %s23
        %p308 = scmp.lt.s32.totalorder %s307, 31
        %s309 = scalar_select %p308, %s307, 31
        %s310 = smul.addr %s309, 8
        %s311 = scalar_lea.vmem %s1, %s310
        %s312 = smul.u32 16, %s23
        %v313 = vld [vmem:[%s311] sm:$0xff]
        %v314 = vld [vmem:[%s311 + $0x8] sm:$0xff]
        %v315 = vld [vmem:[%s311 + $0x10] sm:$0xff]
        %v316 = vld [vmem:[%s311 + $0x18] sm:$0xff]
        %v317 = vld [vmem:[%s311 + $0x20] sm:$0xff]
        %v318 = vld [vmem:[%s311 + $0x28] sm:$0xff]
        %v319 = vld [vmem:[%s311 + $0x30] sm:$0xff]
        %v320 = vld [vmem:[%s311 + $0x38] sm:$0xff]
        %v321 = vld [vmem:[%s311 + $0x40] sm:$0xff]
        %v322 = vld [vmem:[%s311 + $0x48] sm:$0xff]
        %v323 = vld [vmem:[%s311 + $0x50] sm:$0xff]
        %v324 = vld [vmem:[%s311 + $0x58] sm:$0xff]
        %v325 = vld [vmem:[%s311 + $0x60] sm:$0xff]
        %v326 = vld [vmem:[%s311 + $0x68] sm:$0xff]
        %v327 = vld [vmem:[%s311 + $0x70] sm:$0xff]
        %v328 = vld [vmem:[%s311 + $0x78] sm:$0xff]
        %329 = vadd.xlane.f32.xlu0 %v313
        %v330 = vpop.xlane.xlu0 %329
        %331 = vadd.xlane.f32.xlu0 %v314
        %v332 = vpop.xlane.xlu0 %331
        %333 = vadd.xlane.f32.xlu0 %v315
        %v334 = vpop.xlane.xlu0 %333
        %335 = vadd.xlane.f32.xlu0 %v316
        %v336 = vpop.xlane.xlu0 %335
        %337 = vadd.xlane.f32.xlu0 %v317
        %v338 = vpop.xlane.xlu0 %337
        %339 = vadd.xlane.f32.xlu0 %v318
        %v340 = vpop.xlane.xlu0 %339
        %341 = vadd.xlane.f32.xlu0 %v319
        %v342 = vpop.xlane.xlu0 %341
        %343 = vadd.xlane.f32.xlu0 %v320
        %v344 = vpop.xlane.xlu0 %343
        %345 = vadd.xlane.f32.xlu0 %v321
        %v346 = vpop.xlane.xlu0 %345
        %347 = vadd.xlane.f32.xlu0 %v322
        %v348 = vpop.xlane.xlu0 %347
        %349 = vadd.xlane.f32.xlu0 %v323
        %v350 = vpop.xlane.xlu0 %349
        %351 = vadd.xlane.f32.xlu0 %v324
        %v352 = vpop.xlane.xlu0 %351
        %353 = vadd.xlane.f32.xlu0 %v325
        %v354 = vpop.xlane.xlu0 %353
        %355 = vadd.xlane.f32.xlu0 %v326
        %v356 = vpop.xlane.xlu0 %355
        %357 = vadd.xlane.f32.xlu0 %v327
        %v358 = vpop.xlane.xlu0 %357
        %359 = vadd.xlane.f32.xlu0 %v328
        %v360 = vpop.xlane.xlu0 %359
        %v361 = vld [vmem:[%s305] sm:$0xff]
        %v362 = vld [vmem:[%s305 + $0x8] sm:$0xff]
        %v363 = vld [vmem:[%s305 + $0x10] sm:$0xff]
        %v364 = vld [vmem:[%s305 + $0x18] sm:$0xff]
        %v365 = vld [vmem:[%s305 + $0x20] sm:$0xff]
        %v366 = vld [vmem:[%s305 + $0x28] sm:$0xff]
        %v367 = vld [vmem:[%s305 + $0x30] sm:$0xff]
        %v368 = vld [vmem:[%s305 + $0x38] sm:$0xff]
        %v369 = vld [vmem:[%s305 + $0x40] sm:$0xff]
        %v370 = vld [vmem:[%s305 + $0x48] sm:$0xff]
        %v371 = vld [vmem:[%s305 + $0x50] sm:$0xff]
        %v372 = vld [vmem:[%s305 + $0x58] sm:$0xff]
        %v373 = vld [vmem:[%s305 + $0x60] sm:$0xff]
        %v374 = vld [vmem:[%s305 + $0x68] sm:$0xff]
        %v375 = vld [vmem:[%s305 + $0x70] sm:$0xff]
        %v376 = vld [vmem:[%s305 + $0x78] sm:$0xff]
        %v377 = vld [vmem:[#allocation5] sm:$0xf]
        %v378 = vld [vmem:[#allocation5 + $0x8] sm:$0xf]
        %s379 = scalar_lea.vmem [#allocation5], 272
        %v380 = vld [vmem:[%s379] ss:$8 sm:$0x3]
        %v382 = vlaneseq
        %v383 = vshrl.u32 %v382, 7
        %v384 = vsub.s32 0, %v383
        %v385 = vrot.slane %v380, %v384
        %v386 = vlaneseq
        %v387 = vshrl.u32 %v386, 7
        %v388 = vsub.s32 1, %v387
        %v389 = vrot.slane %v380, %v388
        %vm392 = vcmask 31744
        %v394 = vsel %vm392, %v361, 0
        %v397 = vsel %vm392, %v362, 0
        %v400 = vsel %vm392, %v363, 0
        %v403 = vsel %vm392, %v364, 0
        %v406 = vsel %vm392, %v365, 0
        %v409 = vsel %vm392, %v366, 0
        %v412 = vsel %vm392, %v367, 0
        %v415 = vsel %vm392, %v368, 0
        %v418 = vsel %vm392, %v369, 0
        %v421 = vsel %vm392, %v370, 0
        %v424 = vsel %vm392, %v371, 0
        %v427 = vsel %vm392, %v372, 0
        %v430 = vsel %vm392, %v373, 0
        %v433 = vsel %vm392, %v374, 0
        %v436 = vsel %vm392, %v375, 0
        %v439 = vsel %vm392, %v376, 0
        %vm441 = vcmask 1043456
        %v443 = vsel %vm441, %v377, 0
        %v446 = vsel %vm441, %v378, 0
        %448 = vmatprep.subr.mxu0 %v446
        %449 = vmatpush1.msra.mxu0 %v443
        %450 = vmatprep.subr.mxu0 0.0
        %451 = vmatpush1.msra.mxu0 0.0
        %452 = vmatprep.subr.mxu0 0.0
        %453 = vmatpush1.msra.mxu0 0.0
        %454 = vmatprep.subr.mxu0 0.0
        %455 = vmatpush1.msra.mxu0 0.0
        %456 = vmatprep.subr.mxu0 0.0
        %457 = vmatpush1.msra.mxu0 0.0
        %458 = vmatprep.subr.mxu0 0.0
        %459 = vmatpush1.msra.mxu0 0.0
        %460 = vmatprep.subr.mxu0 0.0
        %461 = vmatpush1.msra.mxu0 0.0
        %462 = vmatprep.subr.mxu0 0.0
        %463 = vmatpush1.msra.mxu0 0.0
        %464 = vmatprep.subr.mxu0 0.0
        %465 = vmatpush1.msra.mxu0 0.0
        %466 = vmatprep.subr.mxu0 0.0
        %467 = vmatpush1.msra.mxu0 0.0
        %468 = vmatprep.subr.mxu0 0.0
        %469 = vmatpush1.msra.mxu0 0.0
        %470 = vmatprep.subr.mxu0 0.0
        %471 = vmatpush1.msra.mxu0 0.0
        %472 = vmatprep.subr.mxu0 0.0
        %473 = vmatpush1.msra.mxu0 0.0
        %474 = vmatprep.subr.mxu0 0.0
        %475 = vmatpush1.msra.mxu0 0.0
        %476 = vmatprep.subr.mxu0 0.0
        %477 = vmatpush1.msra.mxu0 0.0
        %478 = vmatprep.subr.mxu0 0.0
        %479 = vmatpush1.msra.mxu0 0.0
        %480 = vmatprep.subr.mxu0 0.0
        %481 = vmatpush1.msra.mxu0 0.0
        %482 = vmatprep.subr.mxu0 0.0
        %483 = vmatpush1.msra.mxu0 0.0
        %484 = vmatprep.subr.mxu0 0.0
        %485 = vmatpush1.msra.mxu0 0.0
        %486 = vmatprep.subr.mxu0 0.0
        %487 = vmatpush1.msra.mxu0 0.0
        %488 = vmatprep.subr.mxu0 0.0
        %489 = vmatpush1.msra.mxu0 0.0
        %490 = vmatprep.subr.mxu0 0.0
        %491 = vmatpush1.msra.mxu0 0.0
        %492 = vmatprep.subr.mxu0 0.0
        %493 = vmatpush1.msra.mxu0 0.0
        %494 = vmatprep.subr.mxu0 0.0
        %495 = vmatpush1.msra.mxu0 0.0
        %496 = vmatprep.subr.mxu0 0.0
        %497 = vmatpush1.msra.mxu0 0.0
        %498 = vmatprep.subr.mxu0 0.0
        %499 = vmatpush1.msra.mxu0 0.0
        %500 = vmatprep.subr.mxu0 0.0
        %501 = vmatpush1.msra.mxu0 0.0
        %502 = vmatprep.subr.mxu0 0.0
        %503 = vmatpush1.msra.mxu0 0.0
        %504 = vmatprep.subr.mxu0 0.0
        %505 = vmatpush1.msra.mxu0 0.0
        %506 = vmatprep.subr.mxu0 0.0
        %507 = vmatpush1.msra.mxu0 0.0
        %508 = vmatprep.subr.mxu0 0.0
        %509 = vmatpush1.msra.mxu0 0.0
        %510 = vmatprep.subr.mxu0 0.0
        %511 = vmatpush1.msra.mxu0 0.0
        %512 = vmatprep.mubr.f32.mxu0 0.0
        %513 = vmatmul.mubr.f32.gmra.mrb[0].mxu0 %v394
        %v514 = vpop.f32.mrb[0].mxu0
        %v515 = vadd.f32 %v385, %v514
        %v516 = vpop.f32.mrb[0].mxu0
        %v517 = vadd.f32 %v389, %v516
        %518 = vmatprep.mubr.f32.mxu0 0.0
        %519 = vmatmul.mubr.f32.gmra.mrb[0].mxu0 %v397
        %v520 = vpop.f32.mrb[0].mxu0
        %v521 = vadd.f32 %v385, %v520
        %v522 = vpop.f32.mrb[0].mxu0
        %v523 = vadd.f32 %v389, %v522
        %524 = vmatprep.mubr.f32.mxu0 0.0
        %525 = vmatmul.mubr.f32.gmra.mrb[0].mxu0 %v400
        %v526 = vpop.f32.mrb[0].mxu0
        %v527 = vadd.f32 %v385, %v526
        %v528 = vpop.f32.mrb[0].mxu0
        %v529 = vadd.f32 %v389, %v528
        %530 = vmatprep.mubr.f32.mxu0 0.0
        %531 = vmatmul.mubr.f32.gmra.mrb[0].mxu0 %v403
        %v532 = vpop.f32.mrb[0].mxu0
        %v533 = vadd.f32 %v385, %v532
        %v534 = vpop.f32.mrb[0].mxu0
        %v535 = vadd.f32 %v389, %v534
        %536 = vmatprep.mubr.f32.mxu0 0.0
        %537 = vmatmul.mubr.f32.gmra.mrb[0].mxu0 %v406
        %v538 = vpop.f32.mrb[0].mxu0
        %v539 = vadd.f32 %v385, %v538
        %v540 = vpop.f32.mrb[0].mxu0
        %v541 = vadd.f32 %v389, %v540
        %542 = vmatprep.mubr.f32.mxu0 0.0
        %543 = vmatmul.mubr.f32.gmra.mrb[0].mxu0 %v409
        %v544 = vpop.f32.mrb[0].mxu0
        %v545 = vadd.f32 %v385, %v544
        %v546 = vpop.f32.mrb[0].mxu0
        %v547 = vadd.f32 %v389, %v546
        %548 = vmatprep.mubr.f32.mxu0 0.0
        %549 = vmatmul.mubr.f32.gmra.mrb[0].mxu0 %v412
        %v550 = vpop.f32.mrb[0].mxu0
        %v551 = vadd.f32 %v385, %v550
        %v552 = vpop.f32.mrb[0].mxu0
        %v553 = vadd.f32 %v389, %v552
        %554 = vmatprep.mubr.f32.mxu0 0.0
        %555 = vmatmul.mubr.f32.gmra.mrb[0].mxu0 %v415
        %v556 = vpop.f32.mrb[0].mxu0
        %v557 = vadd.f32 %v385, %v556
        %v558 = vpop.f32.mrb[0].mxu0
        %v559 = vadd.f32 %v389, %v558
        %560 = vmatprep.mubr.f32.mxu0 0.0
        %561 = vmatmul.mubr.f32.gmra.mrb[0].mxu0 %v418
        %v562 = vpop.f32.mrb[0].mxu0
        %v563 = vadd.f32 %v385, %v562
        %v564 = vpop.f32.mrb[0].mxu0
        %v565 = vadd.f32 %v389, %v564
        %566 = vmatprep.mubr.f32.mxu0 0.0
        %567 = vmatmul.mubr.f32.gmra.mrb[0].mxu0 %v421
        %v568 = vpop.f32.mrb[0].mxu0
        %v569 = vadd.f32 %v385, %v568
        %v570 = vpop.f32.mrb[0].mxu0
        %v571 = vadd.f32 %v389, %v570
        %572 = vmatprep.mubr.f32.mxu0 0.0
        %573 = vmatmul.mubr.f32.gmra.mrb[0].mxu0 %v424
        %v574 = vpop.f32.mrb[0].mxu0
        %v575 = vadd.f32 %v385, %v574
        %v576 = vpop.f32.mrb[0].mxu0
        %v577 = vadd.f32 %v389, %v576
        %578 = vmatprep.mubr.f32.mxu0 0.0
        %579 = vmatmul.mubr.f32.gmra.mrb[0].mxu0 %v427
        %v580 = vpop.f32.mrb[0].mxu0
        %v581 = vadd.f32 %v385, %v580
        %v582 = vpop.f32.mrb[0].mxu0
        %v583 = vadd.f32 %v389, %v582
        %584 = vmatprep.mubr.f32.mxu0 0.0
        %585 = vmatmul.mubr.f32.gmra.mrb[0].mxu0 %v430
        %v586 = vpop.f32.mrb[0].mxu0
        %v587 = vadd.f32 %v385, %v586
        %v588 = vpop.f32.mrb[0].mxu0
        %v589 = vadd.f32 %v389, %v588
        %590 = vmatprep.mubr.f32.mxu0 0.0
        %591 = vmatmul.mubr.f32.gmra.mrb[0].mxu0 %v433
        %v592 = vpop.f32.mrb[0].mxu0
        %v593 = vadd.f32 %v385, %v592
        %v594 = vpop.f32.mrb[0].mxu0
        %v595 = vadd.f32 %v389, %v594
        %596 = vmatprep.mubr.f32.mxu0 0.0
        %597 = vmatmul.mubr.f32.gmra.mrb[0].mxu0 %v436
        %v598 = vpop.f32.mrb[0].mxu0
        %v599 = vadd.f32 %v385, %v598
        %v600 = vpop.f32.mrb[0].mxu0
        %v601 = vadd.f32 %v389, %v600
        %602 = vmatprep.mubr.f32.mxu0 0.0
        %603 = vmatmul.mubr.f32.gmra.mrb[0].mxu0 %v439
        %v604 = vpop.f32.mrb[0].mxu0
        %v605 = vadd.f32 %v385, %v604
        %v606 = vpop.f32.mrb[0].mxu0
        %v607 = vadd.f32 %v389, %v606
        %608 = vdwg.mxu0
        %609 = vmatprep.subr.mxu0 0.0
        %610 = vmatpush1.msra.mxu0 %v515
        %611 = vmatprep.subr.mxu0 0.0
        %612 = vmatpush1.msra.mxu0 %v521
        %613 = vmatprep.subr.mxu0 0.0
        %614 = vmatpush1.msra.mxu0 %v527
        %615 = vmatprep.subr.mxu0 0.0
        %616 = vmatpush1.msra.mxu0 %v533
        %617 = vmatprep.subr.mxu0 0.0
        %618 = vmatpush1.msra.mxu0 %v539
        %619 = vmatprep.subr.mxu0 0.0
        %620 = vmatpush1.msra.mxu0 %v545
        %621 = vmatprep.subr.mxu0 0.0
        %622 = vmatpush1.msra.mxu0 %v551
        %623 = vmatprep.subr.mxu0 0.0
        %624 = vmatpush1.msra.mxu0 %v557
        %625 = vmatprep.subr.mxu0 0.0
        %626 = vmatpush1.msra.mxu0 %v563
        %627 = vmatprep.subr.mxu0 0.0
        %628 = vmatpush1.msra.mxu0 %v569
        %629 = vmatprep.subr.mxu0 0.0
        %630 = vmatpush1.msra.mxu0 %v575
        %631 = vmatprep.subr.mxu0 0.0
        %632 = vmatpush1.msra.mxu0 %v581
        %633 = vmatprep.subr.mxu0 0.0
        %634 = vmatpush1.msra.mxu0 %v587
        %635 = vmatprep.subr.mxu0 0.0
        %636 = vmatpush1.msra.mxu0 %v593
        %637 = vmatprep.subr.mxu0 0.0
        %638 = vmatpush1.msra.mxu0 %v599
        %639 = vmatprep.subr.mxu0 0.0
        %640 = vmatpush1.msra.mxu0 %v605
        %641 = vmatprep.subr.mxu0 0.0
        %642 = vmatpush1.msra.mxu0 0.0
        %643 = vmatprep.subr.mxu0 0.0
        %644 = vmatpush1.msra.mxu0 0.0
        %645 = vmatprep.subr.mxu0 0.0
        %646 = vmatpush1.msra.mxu0 0.0
        %647 = vmatprep.subr.mxu0 0.0
        %648 = vmatpush1.msra.mxu0 0.0
        %649 = vmatprep.subr.mxu0 0.0
        %650 = vmatpush1.msra.mxu0 0.0
        %651 = vmatprep.subr.mxu0 0.0
        %652 = vmatpush1.msra.mxu0 0.0
        %653 = vmatprep.subr.mxu0 0.0
        %654 = vmatpush1.msra.mxu0 0.0
        %655 = vmatprep.subr.mxu0 0.0
        %656 = vmatpush1.msra.mxu0 0.0
        %657 = vmatprep.subr.mxu0 0.0
        %658 = vmatpush1.msra.mxu0 0.0
        %659 = vmatprep.subr.mxu0 0.0
        %660 = vmatpush1.msra.mxu0 0.0
        %661 = vmatprep.subr.mxu0 0.0
        %662 = vmatpush1.msra.mxu0 0.0
        %663 = vmatprep.subr.mxu0 0.0
        %664 = vmatpush1.msra.mxu0 0.0
        %665 = vmatprep.subr.mxu0 0.0
        %666 = vmatpush1.msra.mxu0 0.0
        %667 = vmatprep.subr.mxu0 0.0
        %668 = vmatpush1.msra.mxu0 0.0
        %669 = vmatprep.subr.mxu0 0.0
        %670 = vmatpush1.msra.mxu0 0.0
        %671 = vmatprep.subr.mxu0 0.0
        %672 = vmatpush1.msra.mxu0 0.0
        %673 = vmatprep.mubr.f32.mxu0 0.0
        %674 = vmatmul.mubr.f32.gmra.mrb[0].mxu0 %v313
        %v675 = vpop.f32.mrb[0].mxu0
        %v676 = vadd.f32 0.0, %v675
        %v677 = vpop.f32.mrb[0].mxu0
        %678 = vmatprep.mubr.f32.mxu0 0.0
        %679 = vmatmul.mubr.f32.gmra.mrb[0].mxu0 %v314
        %v680 = vpop.f32.mrb[0].mxu0
        %v681 = vadd.f32 0.0, %v680
        %v682 = vpop.f32.mrb[0].mxu0
        %683 = vmatprep.mubr.f32.mxu0 0.0
        %684 = vmatmul.mubr.f32.gmra.mrb[0].mxu0 %v315
        %v685 = vpop.f32.mrb[0].mxu0
        %v686 = vadd.f32 0.0, %v685
        %v687 = vpop.f32.mrb[0].mxu0
        %688 = vmatprep.mubr.f32.mxu0 0.0
        %689 = vmatmul.mubr.f32.gmra.mrb[0].mxu0 %v316
        %v690 = vpop.f32.mrb[0].mxu0
        %v691 = vadd.f32 0.0, %v690
        %v692 = vpop.f32.mrb[0].mxu0
        %693 = vmatprep.mubr.f32.mxu0 0.0
        %694 = vmatmul.mubr.f32.gmra.mrb[0].mxu0 %v317
        %v695 = vpop.f32.mrb[0].mxu0
        %v696 = vadd.f32 0.0, %v695
        %v697 = vpop.f32.mrb[0].mxu0
        %698 = vmatprep.mubr.f32.mxu0 0.0
        %699 = vmatmul.mubr.f32.gmra.mrb[0].mxu0 %v318
        %v700 = vpop.f32.mrb[0].mxu0
        %v701 = vadd.f32 0.0, %v700
        %v702 = vpop.f32.mrb[0].mxu0
        %703 = vmatprep.mubr.f32.mxu0 0.0
        %704 = vmatmul.mubr.f32.gmra.mrb[0].mxu0 %v319
        %v705 = vpop.f32.mrb[0].mxu0
        %v706 = vadd.f32 0.0, %v705
        %v707 = vpop.f32.mrb[0].mxu0
        %708 = vmatprep.mubr.f32.mxu0 0.0
        %709 = vmatmul.mubr.f32.gmra.mrb[0].mxu0 %v320
        %v710 = vpop.f32.mrb[0].mxu0
        %v711 = vadd.f32 0.0, %v710
        %v712 = vpop.f32.mrb[0].mxu0
        %713 = vmatprep.mubr.f32.mxu0 0.0
        %714 = vmatmul.mubr.f32.gmra.mrb[0].mxu0 %v321
        %v715 = vpop.f32.mrb[0].mxu0
        %v716 = vadd.f32 0.0, %v715
        %v717 = vpop.f32.mrb[0].mxu0
        %718 = vmatprep.mubr.f32.mxu0 0.0
        %719 = vmatmul.mubr.f32.gmra.mrb[0].mxu0 %v322
        %v720 = vpop.f32.mrb[0].mxu0
        %v721 = vadd.f32 0.0, %v720
        %v722 = vpop.f32.mrb[0].mxu0
        %723 = vmatprep.mubr.f32.mxu0 0.0
        %724 = vmatmul.mubr.f32.gmra.mrb[0].mxu0 %v323
        %v725 = vpop.f32.mrb[0].mxu0
        %v726 = vadd.f32 0.0, %v725
        %v727 = vpop.f32.mrb[0].mxu0
        %728 = vmatprep.mubr.f32.mxu0 0.0
        %729 = vmatmul.mubr.f32.gmra.mrb[0].mxu0 %v324
        %v730 = vpop.f32.mrb[0].mxu0
        %v731 = vadd.f32 0.0, %v730
        %v732 = vpop.f32.mrb[0].mxu0
        %733 = vmatprep.mubr.f32.mxu0 0.0
        %734 = vmatmul.mubr.f32.gmra.mrb[0].mxu0 %v325
        %v735 = vpop.f32.mrb[0].mxu0
        %v736 = vadd.f32 0.0, %v735
        %v737 = vpop.f32.mrb[0].mxu0
        %738 = vmatprep.mubr.f32.mxu0 0.0
        %739 = vmatmul.mubr.f32.gmra.mrb[0].mxu0 %v326
        %v740 = vpop.f32.mrb[0].mxu0
        %v741 = vadd.f32 0.0, %v740
        %v742 = vpop.f32.mrb[0].mxu0
        %743 = vmatprep.mubr.f32.mxu0 0.0
        %744 = vmatmul.mubr.f32.gmra.mrb[0].mxu0 %v327
        %v745 = vpop.f32.mrb[0].mxu0
        %v746 = vadd.f32 0.0, %v745
        %v747 = vpop.f32.mrb[0].mxu0
        %748 = vmatprep.mubr.f32.mxu0 0.0
        %749 = vmatmul.mubr.f32.gmra.mrb[0].mxu0 %v328
        %v750 = vpop.f32.mrb[0].mxu0
        %v751 = vadd.f32 0.0, %v750
        %v752 = vpop.f32.mrb[0].mxu0
        %753 = vdwg.mxu0
        %v754 = vmul.f32 %v330, %v515
        %v755 = vmul.f32 %v332, %v521
        %v756 = vmul.f32 %v334, %v527
        %v757 = vmul.f32 %v336, %v533
        %v758 = vmul.f32 %v338, %v539
        %v759 = vmul.f32 %v340, %v545
        %v760 = vmul.f32 %v342, %v551
        %v761 = vmul.f32 %v344, %v557
        %v762 = vmul.f32 %v346, %v563
        %v763 = vmul.f32 %v348, %v569
        %v764 = vmul.f32 %v350, %v575
        %v765 = vmul.f32 %v352, %v581
        %v766 = vmul.f32 %v354, %v587
        %v767 = vmul.f32 %v356, %v593
        %v768 = vmul.f32 %v358, %v599
        %v769 = vmul.f32 %v360, %v605
        %786 = vrot.lane.b32.xlu0 %v754, 64
        %v787 = vpop.permute.xlu0 %786
        %788 = vrot.lane.b32.xlu0 %v755, 64
        %v789 = vpop.permute.xlu0 %788
        %790 = vrot.lane.b32.xlu0 %v756, 64
        %v791 = vpop.permute.xlu0 %790
        %792 = vrot.lane.b32.xlu0 %v757, 64
        %v793 = vpop.permute.xlu0 %792
        %794 = vrot.lane.b32.xlu0 %v758, 64
        %v795 = vpop.permute.xlu0 %794
        %796 = vrot.lane.b32.xlu0 %v759, 64
        %v797 = vpop.permute.xlu0 %796
        %798 = vrot.lane.b32.xlu0 %v760, 64
        %v799 = vpop.permute.xlu0 %798
        %800 = vrot.lane.b32.xlu0 %v761, 64
        %v801 = vpop.permute.xlu0 %800
        %802 = vrot.lane.b32.xlu0 %v762, 64
        %v803 = vpop.permute.xlu0 %802
        %804 = vrot.lane.b32.xlu0 %v763, 64
        %v805 = vpop.permute.xlu0 %804
        %806 = vrot.lane.b32.xlu0 %v764, 64
        %v807 = vpop.permute.xlu0 %806
        %808 = vrot.lane.b32.xlu0 %v765, 64
        %v809 = vpop.permute.xlu0 %808
        %810 = vrot.lane.b32.xlu0 %v766, 64
        %v811 = vpop.permute.xlu0 %810
        %812 = vrot.lane.b32.xlu0 %v767, 64
        %v813 = vpop.permute.xlu0 %812
        %814 = vrot.lane.b32.xlu0 %v768, 64
        %v815 = vpop.permute.xlu0 %814
        %816 = vrot.lane.b32.xlu0 %v769, 64
        %v817 = vpop.permute.xlu0 %816
        %v834 = vsub.f32 %v676, %v787
        %v835 = vsub.f32 %v681, %v789
        %v836 = vsub.f32 %v686, %v791
        %v837 = vsub.f32 %v691, %v793
        %v838 = vsub.f32 %v696, %v795
        %v839 = vsub.f32 %v701, %v797
        %v840 = vsub.f32 %v706, %v799
        %v841 = vsub.f32 %v711, %v801
        %v842 = vsub.f32 %v716, %v803
        %v843 = vsub.f32 %v721, %v805
        %v844 = vsub.f32 %v726, %v807
        %v845 = vsub.f32 %v731, %v809
        %v846 = vsub.f32 %v736, %v811
        %v847 = vsub.f32 %v741, %v813
        %v848 = vsub.f32 %v746, %v815
        %v849 = vsub.f32 %v751, %v817
        %v850 = vadd.f32 %v834, %v517
        %v851 = vadd.f32 %v835, %v523
        %v852 = vadd.f32 %v836, %v529
        %v853 = vadd.f32 %v837, %v535
        %v854 = vadd.f32 %v838, %v541
        %v855 = vadd.f32 %v839, %v547
        %v856 = vadd.f32 %v840, %v553
        %v857 = vadd.f32 %v841, %v559
        %v858 = vadd.f32 %v842, %v565
        %v859 = vadd.f32 %v843, %v571
        %v860 = vadd.f32 %v844, %v577
        %v861 = vadd.f32 %v845, %v583
        %v862 = vadd.f32 %v846, %v589
        %v863 = vadd.f32 %v847, %v595
        %v864 = vadd.f32 %v848, %v601
        %v865 = vadd.f32 %v849, %v607
        %v866 = vmax.f32 %v850, 0.0
        %v867 = vmax.f32 %v851, 0.0
        %v868 = vmax.f32 %v852, 0.0
        %v869 = vmax.f32 %v853, 0.0
        %v870 = vmax.f32 %v854, 0.0
        %v871 = vmax.f32 %v855, 0.0
        %v872 = vmax.f32 %v856, 0.0
        %v873 = vmax.f32 %v857, 0.0
        %v874 = vmax.f32 %v858, 0.0
        %v875 = vmax.f32 %v859, 0.0
        %v876 = vmax.f32 %v860, 0.0
        %v877 = vmax.f32 %v861, 0.0
        %v878 = vmax.f32 %v862, 0.0
        %v879 = vmax.f32 %v863, 0.0
        %v880 = vmax.f32 %v864, 0.0
        %v881 = vmax.f32 %v865, 0.0
        %v882 = vld [vmem:[#allocation5 + $0x10] sm:$0xff]
        %v883 = vld [vmem:[#allocation5 + $0x18] sm:$0xff]
        %v884 = vld [vmem:[#allocation5 + $0x20] sm:$0xff]
        %v885 = vld [vmem:[#allocation5 + $0x28] sm:$0xff]
        %v886 = vld [vmem:[#allocation5 + $0x30] sm:$0xff]
        %v887 = vld [vmem:[#allocation5 + $0x38] sm:$0xff]
        %v888 = vld [vmem:[#allocation5 + $0x40] sm:$0xff]
        %v889 = vld [vmem:[#allocation5 + $0x48] sm:$0xff]
        %v890 = vld [vmem:[#allocation5 + $0x50] sm:$0xff]
        %v891 = vld [vmem:[#allocation5 + $0x58] sm:$0xff]
        %v892 = vld [vmem:[#allocation5 + $0x60] sm:$0xff]
        %v893 = vld [vmem:[#allocation5 + $0x68] sm:$0xff]
        %v894 = vld [vmem:[#allocation5 + $0x70] sm:$0xff]
        %v895 = vld [vmem:[#allocation5 + $0x78] sm:$0xff]
        %v896 = vld [vmem:[#allocation5 + $0x80] sm:$0xff]
        %v897 = vld [vmem:[#allocation5 + $0x88] sm:$0xff]
        %s898 = scalar_lea.vmem [#allocation5], 288
        %v899 = vld [vmem:[%s898] ss:$8 sm:$0x3]
        %v901 = vlaneseq
        %v902 = vshrl.u32 %v901, 7
        %v903 = vsub.s32 0, %v902
        %v904 = vrot.slane %v899, %v903
        %v905 = vlaneseq
        %v906 = vshrl.u32 %v905, 7
        %v907 = vsub.s32 1, %v906
        %v908 = vrot.slane %v899, %v907
        %vm911 = vcmask 523264
        %v913 = vsel %vm911, %v866, 0
        %v916 = vsel %vm911, %v867, 0
        %v919 = vsel %vm911, %v868, 0
        %v922 = vsel %vm911, %v869, 0
        %v925 = vsel %vm911, %v870, 0
        %v928 = vsel %vm911, %v871, 0
        %v931 = vsel %vm911, %v872, 0
        %v934 = vsel %vm911, %v873, 0
        %v937 = vsel %vm911, %v874, 0
        %v940 = vsel %vm911, %v875, 0
        %v943 = vsel %vm911, %v876, 0
        %v946 = vsel %vm911, %v877, 0
        %v949 = vsel %vm911, %v878, 0
        %v952 = vsel %vm911, %v879, 0
        %v955 = vsel %vm911, %v880, 0
        %v958 = vsel %vm911, %v881, 0
        %960 = vmatprep.subr.mxu0 %v883
        %961 = vmatpush1.msra.mxu0 %v882
        %962 = vmatprep.subr.mxu0 %v885
        %963 = vmatpush1.msra.mxu0 %v884
        %964 = vmatprep.subr.mxu0 %v887
        %965 = vmatpush1.msra.mxu0 %v886
        %966 = vmatprep.subr.mxu0 %v889
        %967 = vmatpush1.msra.mxu0 %v888
        %968 = vmatprep.subr.mxu0 %v891
        %969 = vmatpush1.msra.mxu0 %v890
        %970 = vmatprep.subr.mxu0 %v893
        %971 = vmatpush1.msra.mxu0 %v892
        %972 = vmatprep.subr.mxu0 %v895
        %973 = vmatpush1.msra.mxu0 %v894
        %974 = vmatprep.subr.mxu0 %v897
        %975 = vmatpush1.msra.mxu0 %v896
        %976 = vmatprep.subr.mxu0 0.0
        %977 = vmatpush1.msra.mxu0 0.0
        %978 = vmatprep.subr.mxu0 0.0
        %979 = vmatpush1.msra.mxu0 0.0
        %980 = vmatprep.subr.mxu0 0.0
        %981 = vmatpush1.msra.mxu0 0.0
        %982 = vmatprep.subr.mxu0 0.0
        %983 = vmatpush1.msra.mxu0 0.0
        %984 = vmatprep.subr.mxu0 0.0
        %985 = vmatpush1.msra.mxu0 0.0
        %986 = vmatprep.subr.mxu0 0.0
        %987 = vmatpush1.msra.mxu0 0.0
        %988 = vmatprep.subr.mxu0 0.0
        %989 = vmatpush1.msra.mxu0 0.0
        %990 = vmatprep.subr.mxu0 0.0
        %991 = vmatpush1.msra.mxu0 0.0
        %992 = vmatprep.subr.mxu0 0.0
        %993 = vmatpush1.msra.mxu0 0.0
        %994 = vmatprep.subr.mxu0 0.0
        %995 = vmatpush1.msra.mxu0 0.0
        %996 = vmatprep.subr.mxu0 0.0
        %997 = vmatpush1.msra.mxu0 0.0
        %998 = vmatprep.subr.mxu0 0.0
        %999 = vmatpush1.msra.mxu0 0.0
        %1000 = vmatprep.subr.mxu0 0.0
        %1001 = vmatpush1.msra.mxu0 0.0
        %1002 = vmatprep.subr.mxu0 0.0
        %1003 = vmatpush1.msra.mxu0 0.0
        %1004 = vmatprep.subr.mxu0 0.0
        %1005 = vmatpush1.msra.mxu0 0.0
        %1006 = vmatprep.subr.mxu0 0.0
        %1007 = vmatpush1.msra.mxu0 0.0
        %1008 = vmatprep.subr.mxu0 0.0
        %1009 = vmatpush1.msra.mxu0 0.0
        %1010 = vmatprep.subr.mxu0 0.0
        %1011 = vmatpush1.msra.mxu0 0.0
        %1012 = vmatprep.subr.mxu0 0.0
        %1013 = vmatpush1.msra.mxu0 0.0
        %1014 = vmatprep.subr.mxu0 0.0
        %1015 = vmatpush1.msra.mxu0 0.0
        %1016 = vmatprep.subr.mxu0 0.0
        %1017 = vmatpush1.msra.mxu0 0.0
        %1018 = vmatprep.subr.mxu0 0.0
        %1019 = vmatpush1.msra.mxu0 0.0
        %1020 = vmatprep.subr.mxu0 0.0
        %1021 = vmatpush1.msra.mxu0 0.0
        %1022 = vmatprep.subr.mxu0 0.0
        %1023 = vmatpush1.msra.mxu0 0.0
        %1024 = vmatprep.mubr.f32.mxu0 0.0
        %1025 = vmatmul.mubr.f32.gmra.mrb[0].mxu0 %v913
        %v1026 = vpop.f32.mrb[0].mxu0
        %v1027 = vadd.f32 %v904, %v1026
        %v1028 = vpop.f32.mrb[0].mxu0
        %v1029 = vadd.f32 %v908, %v1028
        %1030 = vmatprep.mubr.f32.mxu0 0.0
        %1031 = vmatmul.mubr.f32.gmra.mrb[0].mxu0 %v916
        %v1032 = vpop.f32.mrb[0].mxu0
        %v1033 = vadd.f32 %v904, %v1032
        %v1034 = vpop.f32.mrb[0].mxu0
        %v1035 = vadd.f32 %v908, %v1034
        %1036 = vmatprep.mubr.f32.mxu0 0.0
        %1037 = vmatmul.mubr.f32.gmra.mrb[0].mxu0 %v919
        %v1038 = vpop.f32.mrb[0].mxu0
        %v1039 = vadd.f32 %v904, %v1038
        %v1040 = vpop.f32.mrb[0].mxu0
        %v1041 = vadd.f32 %v908, %v1040
        %1042 = vmatprep.mubr.f32.mxu0 0.0
        %1043 = vmatmul.mubr.f32.gmra.mrb[0].mxu0 %v922
        %v1044 = vpop.f32.mrb[0].mxu0
        %v1045 = vadd.f32 %v904, %v1044
        %v1046 = vpop.f32.mrb[0].mxu0
        %v1047 = vadd.f32 %v908, %v1046
        %1048 = vmatprep.mubr.f32.mxu0 0.0
        %1049 = vmatmul.mubr.f32.gmra.mrb[0].mxu0 %v925
        %v1050 = vpop.f32.mrb[0].mxu0
        %v1051 = vadd.f32 %v904, %v1050
        %v1052 = vpop.f32.mrb[0].mxu0
        %v1053 = vadd.f32 %v908, %v1052
        %1054 = vmatprep.mubr.f32.mxu0 0.0
        %1055 = vmatmul.mubr.f32.gmra.mrb[0].mxu0 %v928
        %v1056 = vpop.f32.mrb[0].mxu0
        %v1057 = vadd.f32 %v904, %v1056
        %v1058 = vpop.f32.mrb[0].mxu0
        %v1059 = vadd.f32 %v908, %v1058
        %1060 = vmatprep.mubr.f32.mxu0 0.0
        %1061 = vmatmul.mubr.f32.gmra.mrb[0].mxu0 %v931
        %v1062 = vpop.f32.mrb[0].mxu0
        %v1063 = vadd.f32 %v904, %v1062
        %v1064 = vpop.f32.mrb[0].mxu0
        %v1065 = vadd.f32 %v908, %v1064
        %1066 = vmatprep.mubr.f32.mxu0 0.0
        %1067 = vmatmul.mubr.f32.gmra.mrb[0].mxu0 %v934
        %v1068 = vpop.f32.mrb[0].mxu0
        %v1069 = vadd.f32 %v904, %v1068
        %v1070 = vpop.f32.mrb[0].mxu0
        %v1071 = vadd.f32 %v908, %v1070
        %1072 = vmatprep.mubr.f32.mxu0 0.0
        %1073 = vmatmul.mubr.f32.gmra.mrb[0].mxu0 %v937
        %v1074 = vpop.f32.mrb[0].mxu0
        %v1075 = vadd.f32 %v904, %v1074
        %v1076 = vpop.f32.mrb[0].mxu0
        %v1077 = vadd.f32 %v908, %v1076
        %1078 = vmatprep.mubr.f32.mxu0 0.0
        %1079 = vmatmul.mubr.f32.gmra.mrb[0].mxu0 %v940
        %v1080 = vpop.f32.mrb[0].mxu0
        %v1081 = vadd.f32 %v904, %v1080
        %v1082 = vpop.f32.mrb[0].mxu0
        %v1083 = vadd.f32 %v908, %v1082
        %1084 = vmatprep.mubr.f32.mxu0 0.0
        %1085 = vmatmul.mubr.f32.gmra.mrb[0].mxu0 %v943
        %v1086 = vpop.f32.mrb[0].mxu0
        %v1087 = vadd.f32 %v904, %v1086
        %v1088 = vpop.f32.mrb[0].mxu0
        %v1089 = vadd.f32 %v908, %v1088
        %1090 = vmatprep.mubr.f32.mxu0 0.0
        %1091 = vmatmul.mubr.f32.gmra.mrb[0].mxu0 %v946
        %v1092 = vpop.f32.mrb[0].mxu0
        %v1093 = vadd.f32 %v904, %v1092
        %v1094 = vpop.f32.mrb[0].mxu0
        %v1095 = vadd.f32 %v908, %v1094
        %1096 = vmatprep.mubr.f32.mxu0 0.0
        %1097 = vmatmul.mubr.f32.gmra.mrb[0].mxu0 %v949
        %v1098 = vpop.f32.mrb[0].mxu0
        %v1099 = vadd.f32 %v904, %v1098
        %v1100 = vpop.f32.mrb[0].mxu0
        %v1101 = vadd.f32 %v908, %v1100
        %1102 = vmatprep.mubr.f32.mxu0 0.0
        %1103 = vmatmul.mubr.f32.gmra.mrb[0].mxu0 %v952
        %v1104 = vpop.f32.mrb[0].mxu0
        %v1105 = vadd.f32 %v904, %v1104
        %v1106 = vpop.f32.mrb[0].mxu0
        %v1107 = vadd.f32 %v908, %v1106
        %1108 = vmatprep.mubr.f32.mxu0 0.0
        %1109 = vmatmul.mubr.f32.gmra.mrb[0].mxu0 %v955
        %v1110 = vpop.f32.mrb[0].mxu0
        %v1111 = vadd.f32 %v904, %v1110
        %v1112 = vpop.f32.mrb[0].mxu0
        %v1113 = vadd.f32 %v908, %v1112
        %1114 = vmatprep.mubr.f32.mxu0 0.0
        %1115 = vmatmul.mubr.f32.gmra.mrb[0].mxu0 %v958
        %v1116 = vpop.f32.mrb[0].mxu0
        %v1117 = vadd.f32 %v904, %v1116
        %v1118 = vpop.f32.mrb[0].mxu0
        %v1119 = vadd.f32 %v908, %v1118
        %1120 = vdwg.mxu0
        %1121 = vmatprep.subr.mxu0 0.0
        %1122 = vmatpush1.msra.mxu0 %v1027
        %1123 = vmatprep.subr.mxu0 0.0
        %1124 = vmatpush1.msra.mxu0 %v1033
        %1125 = vmatprep.subr.mxu0 0.0
        %1126 = vmatpush1.msra.mxu0 %v1039
        %1127 = vmatprep.subr.mxu0 0.0
        %1128 = vmatpush1.msra.mxu0 %v1045
        %1129 = vmatprep.subr.mxu0 0.0
        %1130 = vmatpush1.msra.mxu0 %v1051
        %1131 = vmatprep.subr.mxu0 0.0
        %1132 = vmatpush1.msra.mxu0 %v1057
        %1133 = vmatprep.subr.mxu0 0.0
        %1134 = vmatpush1.msra.mxu0 %v1063
        %1135 = vmatprep.subr.mxu0 0.0
        %1136 = vmatpush1.msra.mxu0 %v1069
        %1137 = vmatprep.subr.mxu0 0.0
        %1138 = vmatpush1.msra.mxu0 %v1075
        %1139 = vmatprep.subr.mxu0 0.0
        %1140 = vmatpush1.msra.mxu0 %v1081
        %1141 = vmatprep.subr.mxu0 0.0
        %1142 = vmatpush1.msra.mxu0 %v1087
        %1143 = vmatprep.subr.mxu0 0.0
        %1144 = vmatpush1.msra.mxu0 %v1093
        %1145 = vmatprep.subr.mxu0 0.0
        %1146 = vmatpush1.msra.mxu0 %v1099
        %1147 = vmatprep.subr.mxu0 0.0
        %1148 = vmatpush1.msra.mxu0 %v1105
        %1149 = vmatprep.subr.mxu0 0.0
        %1150 = vmatpush1.msra.mxu0 %v1111
        %1151 = vmatprep.subr.mxu0 0.0
        %1152 = vmatpush1.msra.mxu0 %v1117
        %1153 = vmatprep.subr.mxu0 0.0
        %1154 = vmatpush1.msra.mxu0 0.0
        %1155 = vmatprep.subr.mxu0 0.0
        %1156 = vmatpush1.msra.mxu0 0.0
        %1157 = vmatprep.subr.mxu0 0.0
        %1158 = vmatpush1.msra.mxu0 0.0
        %1159 = vmatprep.subr.mxu0 0.0
        %1160 = vmatpush1.msra.mxu0 0.0
        %1161 = vmatprep.subr.mxu0 0.0
        %1162 = vmatpush1.msra.mxu0 0.0
        %1163 = vmatprep.subr.mxu0 0.0
        %1164 = vmatpush1.msra.mxu0 0.0
        %1165 = vmatprep.subr.mxu0 0.0
        %1166 = vmatpush1.msra.mxu0 0.0
        %1167 = vmatprep.subr.mxu0 0.0
        %1168 = vmatpush1.msra.mxu0 0.0
        %1169 = vmatprep.subr.mxu0 0.0
        %1170 = vmatpush1.msra.mxu0 0.0
        %1171 = vmatprep.subr.mxu0 0.0
        %1172 = vmatpush1.msra.mxu0 0.0
        %1173 = vmatprep.subr.mxu0 0.0
        %1174 = vmatpush1.msra.mxu0 0.0
        %1175 = vmatprep.subr.mxu0 0.0
        %1176 = vmatpush1.msra.mxu0 0.0
        %1177 = vmatprep.subr.mxu0 0.0
        %1178 = vmatpush1.msra.mxu0 0.0
        %1179 = vmatprep.subr.mxu0 0.0
        %1180 = vmatpush1.msra.mxu0 0.0
        %1181 = vmatprep.subr.mxu0 0.0
        %1182 = vmatpush1.msra.mxu0 0.0
        %1183 = vmatprep.subr.mxu0 0.0
        %1184 = vmatpush1.msra.mxu0 0.0
        %1185 = vmatprep.mubr.f32.mxu0 0.0
        %1186 = vmatmul.mubr.f32.gmra.mrb[0].mxu0 %v313
        %v1187 = vpop.f32.mrb[0].mxu0
        %v1188 = vadd.f32 0.0, %v1187
        %v1189 = vpop.f32.mrb[0].mxu0
        %1190 = vmatprep.mubr.f32.mxu0 0.0
        %1191 = vmatmul.mubr.f32.gmra.mrb[0].mxu0 %v314
        %v1192 = vpop.f32.mrb[0].mxu0
        %v1193 = vadd.f32 0.0, %v1192
        %v1194 = vpop.f32.mrb[0].mxu0
        %1195 = vmatprep.mubr.f32.mxu0 0.0
        %1196 = vmatmul.mubr.f32.gmra.mrb[0].mxu0 %v315
        %v1197 = vpop.f32.mrb[0].mxu0
        %v1198 = vadd.f32 0.0, %v1197
        %v1199 = vpop.f32.mrb[0].mxu0
        %1200 = vmatprep.mubr.f32.mxu0 0.0
        %1201 = vmatmul.mubr.f32.gmra.mrb[0].mxu0 %v316
        %v1202 = vpop.f32.mrb[0].mxu0
        %v1203 = vadd.f32 0.0, %v1202
        %v1204 = vpop.f32.mrb[0].mxu0
        %1205 = vmatprep.mubr.f32.mxu0 0.0
        %1206 = vmatmul.mubr.f32.gmra.mrb[0].mxu0 %v317
        %v1207 = vpop.f32.mrb[0].mxu0
        %v1208 = vadd.f32 0.0, %v1207
        %v1209 = vpop.f32.mrb[0].mxu0
        %1210 = vmatprep.mubr.f32.mxu0 0.0
        %1211 = vmatmul.mubr.f32.gmra.mrb[0].mxu0 %v318
        %v1212 = vpop.f32.mrb[0].mxu0
        %v1213 = vadd.f32 0.0, %v1212
        %v1214 = vpop.f32.mrb[0].mxu0
        %1215 = vmatprep.mubr.f32.mxu0 0.0
        %1216 = vmatmul.mubr.f32.gmra.mrb[0].mxu0 %v319
        %v1217 = vpop.f32.mrb[0].mxu0
        %v1218 = vadd.f32 0.0, %v1217
        %v1219 = vpop.f32.mrb[0].mxu0
        %1220 = vmatprep.mubr.f32.mxu0 0.0
        %1221 = vmatmul.mubr.f32.gmra.mrb[0].mxu0 %v320
        %v1222 = vpop.f32.mrb[0].mxu0
        %v1223 = vadd.f32 0.0, %v1222
        %v1224 = vpop.f32.mrb[0].mxu0
        %1225 = vmatprep.mubr.f32.mxu0 0.0
        %1226 = vmatmul.mubr.f32.gmra.mrb[0].mxu0 %v321
        %v1227 = vpop.f32.mrb[0].mxu0
        %v1228 = vadd.f32 0.0, %v1227
        %v1229 = vpop.f32.mrb[0].mxu0
        %1230 = vmatprep.mubr.f32.mxu0 0.0
        %1231 = vmatmul.mubr.f32.gmra.mrb[0].mxu0 %v322
        %v1232 = vpop.f32.mrb[0].mxu0
        %v1233 = vadd.f32 0.0, %v1232
        %v1234 = vpop.f32.mrb[0].mxu0
        %1235 = vmatprep.mubr.f32.mxu0 0.0
        %1236 = vmatmul.mubr.f32.gmra.mrb[0].mxu0 %v323
        %v1237 = vpop.f32.mrb[0].mxu0
        %v1238 = vadd.f32 0.0, %v1237
        %v1239 = vpop.f32.mrb[0].mxu0
        %1240 = vmatprep.mubr.f32.mxu0 0.0
        %1241 = vmatmul.mubr.f32.gmra.mrb[0].mxu0 %v324
        %v1242 = vpop.f32.mrb[0].mxu0
        %v1243 = vadd.f32 0.0, %v1242
        %v1244 = vpop.f32.mrb[0].mxu0
        %1245 = vmatprep.mubr.f32.mxu0 0.0
        %1246 = vmatmul.mubr.f32.gmra.mrb[0].mxu0 %v325
        %v1247 = vpop.f32.mrb[0].mxu0
        %v1248 = vadd.f32 0.0, %v1247
        %v1249 = vpop.f32.mrb[0].mxu0
        %1250 = vmatprep.mubr.f32.mxu0 0.0
        %1251 = vmatmul.mubr.f32.gmra.mrb[0].mxu0 %v326
        %v1252 = vpop.f32.mrb[0].mxu0
        %v1253 = vadd.f32 0.0, %v1252
        %v1254 = vpop.f32.mrb[0].mxu0
        %1255 = vmatprep.mubr.f32.mxu0 0.0
        %1256 = vmatmul.mubr.f32.gmra.mrb[0].mxu0 %v327
        %v1257 = vpop.f32.mrb[0].mxu0
        %v1258 = vadd.f32 0.0, %v1257
        %v1259 = vpop.f32.mrb[0].mxu0
        %1260 = vmatprep.mubr.f32.mxu0 0.0
        %1261 = vmatmul.mubr.f32.gmra.mrb[0].mxu0 %v328
        %v1262 = vpop.f32.mrb[0].mxu0
        %v1263 = vadd.f32 0.0, %v1262
        %v1264 = vpop.f32.mrb[0].mxu0
        %1265 = vdwg.mxu0
        %v1266 = vmul.f32 %v330, %v1027
        %v1267 = vmul.f32 %v332, %v1033
        %v1268 = vmul.f32 %v334, %v1039
        %v1269 = vmul.f32 %v336, %v1045
        %v1270 = vmul.f32 %v338, %v1051
        %v1271 = vmul.f32 %v340, %v1057
        %v1272 = vmul.f32 %v342, %v1063
        %v1273 = vmul.f32 %v344, %v1069
        %v1274 = vmul.f32 %v346, %v1075
        %v1275 = vmul.f32 %v348, %v1081
        %v1276 = vmul.f32 %v350, %v1087
        %v1277 = vmul.f32 %v352, %v1093
        %v1278 = vmul.f32 %v354, %v1099
        %v1279 = vmul.f32 %v356, %v1105
        %v1280 = vmul.f32 %v358, %v1111
        %v1281 = vmul.f32 %v360, %v1117
        %1298 = vrot.lane.b32.xlu0 %v1266, 64
        %v1299 = vpop.permute.xlu0 %1298
        %1300 = vrot.lane.b32.xlu0 %v1267, 64
        %v1301 = vpop.permute.xlu0 %1300
        %1302 = vrot.lane.b32.xlu0 %v1268, 64
        %v1303 = vpop.permute.xlu0 %1302
        %1304 = vrot.lane.b32.xlu0 %v1269, 64
        %v1305 = vpop.permute.xlu0 %1304
        %1306 = vrot.lane.b32.xlu0 %v1270, 64
        %v1307 = vpop.permute.xlu0 %1306
        %1308 = vrot.lane.b32.xlu0 %v1271, 64
        %v1309 = vpop.permute.xlu0 %1308
        %1310 = vrot.lane.b32.xlu0 %v1272, 64
        %v1311 = vpop.permute.xlu0 %1310
        %1312 = vrot.lane.b32.xlu0 %v1273, 64
        %v1313 = vpop.permute.xlu0 %1312
        %1314 = vrot.lane.b32.xlu0 %v1274, 64
        %v1315 = vpop.permute.xlu0 %1314
        %1316 = vrot.lane.b32.xlu0 %v1275, 64
        %v1317 = vpop.permute.xlu0 %1316
        %1318 = vrot.lane.b32.xlu0 %v1276, 64
        %v1319 = vpop.permute.xlu0 %1318
        %1320 = vrot.lane.b32.xlu0 %v1277, 64
        %v1321 = vpop.permute.xlu0 %1320
        %1322 = vrot.lane.b32.xlu0 %v1278, 64
        %v1323 = vpop.permute.xlu0 %1322
        %1324 = vrot.lane.b32.xlu0 %v1279, 64
        %v1325 = vpop.permute.xlu0 %1324
        %1326 = vrot.lane.b32.xlu0 %v1280, 64
        %v1327 = vpop.permute.xlu0 %1326
        %1328 = vrot.lane.b32.xlu0 %v1281, 64
        %v1329 = vpop.permute.xlu0 %1328
        %v1346 = vsub.f32 %v1188, %v1299
        %v1347 = vsub.f32 %v1193, %v1301
        %v1348 = vsub.f32 %v1198, %v1303
        %v1349 = vsub.f32 %v1203, %v1305
        %v1350 = vsub.f32 %v1208, %v1307
        %v1351 = vsub.f32 %v1213, %v1309
        %v1352 = vsub.f32 %v1218, %v1311
        %v1353 = vsub.f32 %v1223, %v1313
        %v1354 = vsub.f32 %v1228, %v1315
        %v1355 = vsub.f32 %v1233, %v1317
        %v1356 = vsub.f32 %v1238, %v1319
        %v1357 = vsub.f32 %v1243, %v1321
        %v1358 = vsub.f32 %v1248, %v1323
        %v1359 = vsub.f32 %v1253, %v1325
        %v1360 = vsub.f32 %v1258, %v1327
        %v1361 = vsub.f32 %v1263, %v1329
        %v1362 = vadd.f32 %v1346, %v1029
        %v1363 = vadd.f32 %v1347, %v1035
        %v1364 = vadd.f32 %v1348, %v1041
        %v1365 = vadd.f32 %v1349, %v1047
        %v1366 = vadd.f32 %v1350, %v1053
        %v1367 = vadd.f32 %v1351, %v1059
        %v1368 = vadd.f32 %v1352, %v1065
        %v1369 = vadd.f32 %v1353, %v1071
        %v1370 = vadd.f32 %v1354, %v1077
        %v1371 = vadd.f32 %v1355, %v1083
        %v1372 = vadd.f32 %v1356, %v1089
        %v1373 = vadd.f32 %v1357, %v1095
        %v1374 = vadd.f32 %v1358, %v1101
        %v1375 = vadd.f32 %v1359, %v1107
        %v1376 = vadd.f32 %v1360, %v1113
        %v1377 = vadd.f32 %v1361, %v1119
        %v1378 = vmax.f32 %v1362, 0.0
        %v1379 = vmax.f32 %v1363, 0.0
        %v1380 = vmax.f32 %v1364, 0.0
        %v1381 = vmax.f32 %v1365, 0.0
        %v1382 = vmax.f32 %v1366, 0.0
        %v1383 = vmax.f32 %v1367, 0.0
        %v1384 = vmax.f32 %v1368, 0.0
        %v1385 = vmax.f32 %v1369, 0.0
        %v1386 = vmax.f32 %v1370, 0.0
        %v1387 = vmax.f32 %v1371, 0.0
        %v1388 = vmax.f32 %v1372, 0.0
        %v1389 = vmax.f32 %v1373, 0.0
        %v1390 = vmax.f32 %v1374, 0.0
        %v1391 = vmax.f32 %v1375, 0.0
        %v1392 = vmax.f32 %v1376, 0.0
        %v1393 = vmax.f32 %v1377, 0.0
        %v1394 = vld [vmem:[#allocation5 + $0x90] sm:$0xff]
        %v1395 = vld [vmem:[#allocation5 + $0x98] sm:$0xff]
        %v1396 = vld [vmem:[#allocation5 + $0xa0] sm:$0xff]
        %v1397 = vld [vmem:[#allocation5 + $0xa8] sm:$0xff]
        %v1398 = vld [vmem:[#allocation5 + $0xb0] sm:$0xff]
        %v1399 = vld [vmem:[#allocation5 + $0xb8] sm:$0xff]
        %v1400 = vld [vmem:[#allocation5 + $0xc0] sm:$0xff]
        %v1401 = vld [vmem:[#allocation5 + $0xc8] sm:$0xff]
        %v1402 = vld [vmem:[#allocation5 + $0xd0] sm:$0xff]
        %v1403 = vld [vmem:[#allocation5 + $0xd8] sm:$0xff]
        %v1404 = vld [vmem:[#allocation5 + $0xe0] sm:$0xff]
        %v1405 = vld [vmem:[#allocation5 + $0xe8] sm:$0xff]
        %v1406 = vld [vmem:[#allocation5 + $0xf0] sm:$0xff]
        %v1407 = vld [vmem:[#allocation5 + $0xf8] sm:$0xff]
        %v1408 = vld [vmem:[#allocation5 + $0x100] sm:$0xff]
        %v1409 = vld [vmem:[#allocation5 + $0x108] sm:$0xff]
        %s1410 = scalar_lea.vmem [#allocation5], 304
        %v1411 = vld [vmem:[%s1410] ss:$8 sm:$0x3]
        %v1413 = vlaneseq
        %v1414 = vshrl.u32 %v1413, 7
        %v1415 = vsub.s32 0, %v1414
        %v1416 = vrot.slane %v1411, %v1415
        %v1417 = vlaneseq
        %v1418 = vshrl.u32 %v1417, 7
        %v1419 = vsub.s32 1, %v1418
        %v1420 = vrot.slane %v1411, %v1419
        %v1424 = vsel %vm911, %v1378, 0
        %v1427 = vsel %vm911, %v1379, 0
        %v1430 = vsel %vm911, %v1380, 0
        %v1433 = vsel %vm911, %v1381, 0
        %v1436 = vsel %vm911, %v1382, 0
        %v1439 = vsel %vm911, %v1383, 0
        %v1442 = vsel %vm911, %v1384, 0
        %v1445 = vsel %vm911, %v1385, 0
        %v1448 = vsel %vm911, %v1386, 0
        %v1451 = vsel %vm911, %v1387, 0
        %v1454 = vsel %vm911, %v1388, 0
        %v1457 = vsel %vm911, %v1389, 0
        %v1460 = vsel %vm911, %v1390, 0
        %v1463 = vsel %vm911, %v1391, 0
        %v1466 = vsel %vm911, %v1392, 0
        %v1469 = vsel %vm911, %v1393, 0
        %1471 = vmatprep.subr.mxu0 %v1395
        %1472 = vmatpush1.msra.mxu0 %v1394
        %1473 = vmatprep.subr.mxu0 %v1397
        %1474 = vmatpush1.msra.mxu0 %v1396
        %1475 = vmatprep.subr.mxu0 %v1399
        %1476 = vmatpush1.msra.mxu0 %v1398
        %1477 = vmatprep.subr.mxu0 %v1401
        %1478 = vmatpush1.msra.mxu0 %v1400
        %1479 = vmatprep.subr.mxu0 %v1403
        %1480 = vmatpush1.msra.mxu0 %v1402
        %1481 = vmatprep.subr.mxu0 %v1405
        %1482 = vmatpush1.msra.mxu0 %v1404
        %1483 = vmatprep.subr.mxu0 %v1407
        %1484 = vmatpush1.msra.mxu0 %v1406
        %1485 = vmatprep.subr.mxu0 %v1409
        %1486 = vmatpush1.msra.mxu0 %v1408
        %1487 = vmatprep.subr.mxu0 0.0
        %1488 = vmatpush1.msra.mxu0 0.0
        %1489 = vmatprep.subr.mxu0 0.0
        %1490 = vmatpush1.msra.mxu0 0.0
        %1491 = vmatprep.subr.mxu0 0.0
        %1492 = vmatpush1.msra.mxu0 0.0
        %1493 = vmatprep.subr.mxu0 0.0
        %1494 = vmatpush1.msra.mxu0 0.0
        %1495 = vmatprep.subr.mxu0 0.0
        %1496 = vmatpush1.msra.mxu0 0.0
        %1497 = vmatprep.subr.mxu0 0.0
        %1498 = vmatpush1.msra.mxu0 0.0
        %1499 = vmatprep.subr.mxu0 0.0
        %1500 = vmatpush1.msra.mxu0 0.0
        %1501 = vmatprep.subr.mxu0 0.0
        %1502 = vmatpush1.msra.mxu0 0.0
        %1503 = vmatprep.subr.mxu0 0.0
        %1504 = vmatpush1.msra.mxu0 0.0
        %1505 = vmatprep.subr.mxu0 0.0
        %1506 = vmatpush1.msra.mxu0 0.0
        %1507 = vmatprep.subr.mxu0 0.0
        %1508 = vmatpush1.msra.mxu0 0.0
        %1509 = vmatprep.subr.mxu0 0.0
        %1510 = vmatpush1.msra.mxu0 0.0
        %1511 = vmatprep.subr.mxu0 0.0
        %1512 = vmatpush1.msra.mxu0 0.0
        %1513 = vmatprep.subr.mxu0 0.0
        %1514 = vmatpush1.msra.mxu0 0.0
        %1515 = vmatprep.subr.mxu0 0.0
        %1516 = vmatpush1.msra.mxu0 0.0
        %1517 = vmatprep.subr.mxu0 0.0
        %1518 = vmatpush1.msra.mxu0 0.0
        %1519 = vmatprep.subr.mxu0 0.0
        %1520 = vmatpush1.msra.mxu0 0.0
        %1521 = vmatprep.subr.mxu0 0.0
        %1522 = vmatpush1.msra.mxu0 0.0
        %1523 = vmatprep.subr.mxu0 0.0
        %1524 = vmatpush1.msra.mxu0 0.0
        %1525 = vmatprep.subr.mxu0 0.0
        %1526 = vmatpush1.msra.mxu0 0.0
        %1527 = vmatprep.subr.mxu0 0.0
        %1528 = vmatpush1.msra.mxu0 0.0
        %1529 = vmatprep.subr.mxu0 0.0
        %1530 = vmatpush1.msra.mxu0 0.0
        %1531 = vmatprep.subr.mxu0 0.0
        %1532 = vmatpush1.msra.mxu0 0.0
        %1533 = vmatprep.subr.mxu0 0.0
        %1534 = vmatpush1.msra.mxu0 0.0
        %1535 = vmatprep.mubr.f32.mxu0 0.0
        %1536 = vmatmul.mubr.f32.gmra.mrb[0].mxu0 %v1424
        %v1537 = vpop.f32.mrb[0].mxu0
        %v1538 = vadd.f32 %v1416, %v1537
        %v1539 = vpop.f32.mrb[0].mxu0
        %v1540 = vadd.f32 %v1420, %v1539
        %1541 = vmatprep.mubr.f32.mxu0 0.0
        %1542 = vmatmul.mubr.f32.gmra.mrb[0].mxu0 %v1427
        %v1543 = vpop.f32.mrb[0].mxu0
        %v1544 = vadd.f32 %v1416, %v1543
        %v1545 = vpop.f32.mrb[0].mxu0
        %v1546 = vadd.f32 %v1420, %v1545
        %1547 = vmatprep.mubr.f32.mxu0 0.0
        %1548 = vmatmul.mubr.f32.gmra.mrb[0].mxu0 %v1430
        %v1549 = vpop.f32.mrb[0].mxu0
        %v1550 = vadd.f32 %v1416, %v1549
        %v1551 = vpop.f32.mrb[0].mxu0
        %v1552 = vadd.f32 %v1420, %v1551
        %1553 = vmatprep.mubr.f32.mxu0 0.0
        %1554 = vmatmul.mubr.f32.gmra.mrb[0].mxu0 %v1433
        %v1555 = vpop.f32.mrb[0].mxu0
        %v1556 = vadd.f32 %v1416, %v1555
        %v1557 = vpop.f32.mrb[0].mxu0
        %v1558 = vadd.f32 %v1420, %v1557
        %1559 = vmatprep.mubr.f32.mxu0 0.0
        %1560 = vmatmul.mubr.f32.gmra.mrb[0].mxu0 %v1436
        %v1561 = vpop.f32.mrb[0].mxu0
        %v1562 = vadd.f32 %v1416, %v1561
        %v1563 = vpop.f32.mrb[0].mxu0
        %v1564 = vadd.f32 %v1420, %v1563
        %1565 = vmatprep.mubr.f32.mxu0 0.0
        %1566 = vmatmul.mubr.f32.gmra.mrb[0].mxu0 %v1439
        %v1567 = vpop.f32.mrb[0].mxu0
        %v1568 = vadd.f32 %v1416, %v1567
        %v1569 = vpop.f32.mrb[0].mxu0
        %v1570 = vadd.f32 %v1420, %v1569
        %1571 = vmatprep.mubr.f32.mxu0 0.0
        %1572 = vmatmul.mubr.f32.gmra.mrb[0].mxu0 %v1442
        %v1573 = vpop.f32.mrb[0].mxu0
        %v1574 = vadd.f32 %v1416, %v1573
        %v1575 = vpop.f32.mrb[0].mxu0
        %v1576 = vadd.f32 %v1420, %v1575
        %1577 = vmatprep.mubr.f32.mxu0 0.0
        %1578 = vmatmul.mubr.f32.gmra.mrb[0].mxu0 %v1445
        %v1579 = vpop.f32.mrb[0].mxu0
        %v1580 = vadd.f32 %v1416, %v1579
        %v1581 = vpop.f32.mrb[0].mxu0
        %v1582 = vadd.f32 %v1420, %v1581
        %1583 = vmatprep.mubr.f32.mxu0 0.0
        %1584 = vmatmul.mubr.f32.gmra.mrb[0].mxu0 %v1448
        %v1585 = vpop.f32.mrb[0].mxu0
        %v1586 = vadd.f32 %v1416, %v1585
        %v1587 = vpop.f32.mrb[0].mxu0
        %v1588 = vadd.f32 %v1420, %v1587
        %1589 = vmatprep.mubr.f32.mxu0 0.0
        %1590 = vmatmul.mubr.f32.gmra.mrb[0].mxu0 %v1451
        %v1591 = vpop.f32.mrb[0].mxu0
        %v1592 = vadd.f32 %v1416, %v1591
        %v1593 = vpop.f32.mrb[0].mxu0
        %v1594 = vadd.f32 %v1420, %v1593
        %1595 = vmatprep.mubr.f32.mxu0 0.0
        %1596 = vmatmul.mubr.f32.gmra.mrb[0].mxu0 %v1454
        %v1597 = vpop.f32.mrb[0].mxu0
        %v1598 = vadd.f32 %v1416, %v1597
        %v1599 = vpop.f32.mrb[0].mxu0
        %v1600 = vadd.f32 %v1420, %v1599
        %1601 = vmatprep.mubr.f32.mxu0 0.0
        %1602 = vmatmul.mubr.f32.gmra.mrb[0].mxu0 %v1457
        %v1603 = vpop.f32.mrb[0].mxu0
        %v1604 = vadd.f32 %v1416, %v1603
        %v1605 = vpop.f32.mrb[0].mxu0
        %v1606 = vadd.f32 %v1420, %v1605
        %1607 = vmatprep.mubr.f32.mxu0 0.0
        %1608 = vmatmul.mubr.f32.gmra.mrb[0].mxu0 %v1460
        %v1609 = vpop.f32.mrb[0].mxu0
        %v1610 = vadd.f32 %v1416, %v1609
        %v1611 = vpop.f32.mrb[0].mxu0
        %v1612 = vadd.f32 %v1420, %v1611
        %1613 = vmatprep.mubr.f32.mxu0 0.0
        %1614 = vmatmul.mubr.f32.gmra.mrb[0].mxu0 %v1463
        %v1615 = vpop.f32.mrb[0].mxu0
        %v1616 = vadd.f32 %v1416, %v1615
        %v1617 = vpop.f32.mrb[0].mxu0
        %v1618 = vadd.f32 %v1420, %v1617
        %1619 = vmatprep.mubr.f32.mxu0 0.0
        %1620 = vmatmul.mubr.f32.gmra.mrb[0].mxu0 %v1466
        %v1621 = vpop.f32.mrb[0].mxu0
        %v1622 = vadd.f32 %v1416, %v1621
        %v1623 = vpop.f32.mrb[0].mxu0
        %v1624 = vadd.f32 %v1420, %v1623
        %1625 = vmatprep.mubr.f32.mxu0 0.0
        %1626 = vmatmul.mubr.f32.gmra.mrb[0].mxu0 %v1469
        %v1627 = vpop.f32.mrb[0].mxu0
        %v1628 = vadd.f32 %v1416, %v1627
        %v1629 = vpop.f32.mrb[0].mxu0
        %v1630 = vadd.f32 %v1420, %v1629
        %1631 = vdwg.mxu0
        %1632 = vmatprep.subr.mxu0 0.0
        %1633 = vmatpush1.msra.mxu0 %v1538
        %1634 = vmatprep.subr.mxu0 0.0
        %1635 = vmatpush1.msra.mxu0 %v1544
        %1636 = vmatprep.subr.mxu0 0.0
        %1637 = vmatpush1.msra.mxu0 %v1550
        %1638 = vmatprep.subr.mxu0 0.0
        %1639 = vmatpush1.msra.mxu0 %v1556
        %1640 = vmatprep.subr.mxu0 0.0
        %1641 = vmatpush1.msra.mxu0 %v1562
        %1642 = vmatprep.subr.mxu0 0.0
        %1643 = vmatpush1.msra.mxu0 %v1568
        %1644 = vmatprep.subr.mxu0 0.0
        %1645 = vmatpush1.msra.mxu0 %v1574
        %1646 = vmatprep.subr.mxu0 0.0
        %1647 = vmatpush1.msra.mxu0 %v1580
        %1648 = vmatprep.subr.mxu0 0.0
        %1649 = vmatpush1.msra.mxu0 %v1586
        %1650 = vmatprep.subr.mxu0 0.0
        %1651 = vmatpush1.msra.mxu0 %v1592
        %1652 = vmatprep.subr.mxu0 0.0
        %1653 = vmatpush1.msra.mxu0 %v1598
        %1654 = vmatprep.subr.mxu0 0.0
        %1655 = vmatpush1.msra.mxu0 %v1604
        %1656 = vmatprep.subr.mxu0 0.0
        %1657 = vmatpush1.msra.mxu0 %v1610
        %1658 = vmatprep.subr.mxu0 0.0
        %1659 = vmatpush1.msra.mxu0 %v1616
        %1660 = vmatprep.subr.mxu0 0.0
        %1661 = vmatpush1.msra.mxu0 %v1622
        %1662 = vmatprep.subr.mxu0 0.0
        %1663 = vmatpush1.msra.mxu0 %v1628
        %1664 = vmatprep.subr.mxu0 0.0
        %1665 = vmatpush1.msra.mxu0 0.0
        %1666 = vmatprep.subr.mxu0 0.0
        %1667 = vmatpush1.msra.mxu0 0.0
        %1668 = vmatprep.subr.mxu0 0.0
        %1669 = vmatpush1.msra.mxu0 0.0
        %1670 = vmatprep.subr.mxu0 0.0
        %1671 = vmatpush1.msra.mxu0 0.0
        %1672 = vmatprep.subr.mxu0 0.0
        %1673 = vmatpush1.msra.mxu0 0.0
        %1674 = vmatprep.subr.mxu0 0.0
        %1675 = vmatpush1.msra.mxu0 0.0
        %1676 = vmatprep.subr.mxu0 0.0
        %1677 = vmatpush1.msra.mxu0 0.0
        %1678 = vmatprep.subr.mxu0 0.0
        %1679 = vmatpush1.msra.mxu0 0.0
        %1680 = vmatprep.subr.mxu0 0.0
        %1681 = vmatpush1.msra.mxu0 0.0
        %1682 = vmatprep.subr.mxu0 0.0
        %1683 = vmatpush1.msra.mxu0 0.0
        %1684 = vmatprep.subr.mxu0 0.0
        %1685 = vmatpush1.msra.mxu0 0.0
        %1686 = vmatprep.subr.mxu0 0.0
        %1687 = vmatpush1.msra.mxu0 0.0
        %1688 = vmatprep.subr.mxu0 0.0
        %1689 = vmatpush1.msra.mxu0 0.0
        %1690 = vmatprep.subr.mxu0 0.0
        %1691 = vmatpush1.msra.mxu0 0.0
        %1692 = vmatprep.subr.mxu0 0.0
        %1693 = vmatpush1.msra.mxu0 0.0
        %1694 = vmatprep.subr.mxu0 0.0
        %1695 = vmatpush1.msra.mxu0 0.0
        %1696 = vmatprep.mubr.f32.mxu0 0.0
        %1697 = vmatmul.mubr.f32.gmra.mrb[0].mxu0 %v313
        %v1698 = vpop.f32.mrb[0].mxu0
        %v1699 = vadd.f32 0.0, %v1698
        %v1700 = vpop.f32.mrb[0].mxu0
        %1701 = vmatprep.mubr.f32.mxu0 0.0
        %1702 = vmatmul.mubr.f32.gmra.mrb[0].mxu0 %v314
        %v1703 = vpop.f32.mrb[0].mxu0
        %v1704 = vadd.f32 0.0, %v1703
        %v1705 = vpop.f32.mrb[0].mxu0
        %1706 = vmatprep.mubr.f32.mxu0 0.0
        %1707 = vmatmul.mubr.f32.gmra.mrb[0].mxu0 %v315
        %v1708 = vpop.f32.mrb[0].mxu0
        %v1709 = vadd.f32 0.0, %v1708
        %v1710 = vpop.f32.mrb[0].mxu0
        %1711 = vmatprep.mubr.f32.mxu0 0.0
        %1712 = vmatmul.mubr.f32.gmra.mrb[0].mxu0 %v316
        %v1713 = vpop.f32.mrb[0].mxu0
        %v1714 = vadd.f32 0.0, %v1713
        %v1715 = vpop.f32.mrb[0].mxu0
        %1716 = vmatprep.mubr.f32.mxu0 0.0
        %1717 = vmatmul.mubr.f32.gmra.mrb[0].mxu0 %v317
        %v1718 = vpop.f32.mrb[0].mxu0
        %v1719 = vadd.f32 0.0, %v1718
        %v1720 = vpop.f32.mrb[0].mxu0
        %1721 = vmatprep.mubr.f32.mxu0 0.0
        %1722 = vmatmul.mubr.f32.gmra.mrb[0].mxu0 %v318
        %v1723 = vpop.f32.mrb[0].mxu0
        %v1724 = vadd.f32 0.0, %v1723
        %v1725 = vpop.f32.mrb[0].mxu0
        %1726 = vmatprep.mubr.f32.mxu0 0.0
        %1727 = vmatmul.mubr.f32.gmra.mrb[0].mxu0 %v319
        %v1728 = vpop.f32.mrb[0].mxu0
        %v1729 = vadd.f32 0.0, %v1728
        %v1730 = vpop.f32.mrb[0].mxu0
        %1731 = vmatprep.mubr.f32.mxu0 0.0
        %1732 = vmatmul.mubr.f32.gmra.mrb[0].mxu0 %v320
        %v1733 = vpop.f32.mrb[0].mxu0
        %v1734 = vadd.f32 0.0, %v1733
        %v1735 = vpop.f32.mrb[0].mxu0
        %1736 = vmatprep.mubr.f32.mxu0 0.0
        %1737 = vmatmul.mubr.f32.gmra.mrb[0].mxu0 %v321
        %v1738 = vpop.f32.mrb[0].mxu0
        %v1739 = vadd.f32 0.0, %v1738
        %v1740 = vpop.f32.mrb[0].mxu0
        %1741 = vmatprep.mubr.f32.mxu0 0.0
        %1742 = vmatmul.mubr.f32.gmra.mrb[0].mxu0 %v322
        %v1743 = vpop.f32.mrb[0].mxu0
        %v1744 = vadd.f32 0.0, %v1743
        %v1745 = vpop.f32.mrb[0].mxu0
        %1746 = vmatprep.mubr.f32.mxu0 0.0
        %1747 = vmatmul.mubr.f32.gmra.mrb[0].mxu0 %v323
        %v1748 = vpop.f32.mrb[0].mxu0
        %v1749 = vadd.f32 0.0, %v1748
        %v1750 = vpop.f32.mrb[0].mxu0
        %1751 = vmatprep.mubr.f32.mxu0 0.0
        %1752 = vmatmul.mubr.f32.gmra.mrb[0].mxu0 %v324
        %v1753 = vpop.f32.mrb[0].mxu0
        %v1754 = vadd.f32 0.0, %v1753
        %v1755 = vpop.f32.mrb[0].mxu0
        %1756 = vmatprep.mubr.f32.mxu0 0.0
        %1757 = vmatmul.mubr.f32.gmra.mrb[0].mxu0 %v325
        %v1758 = vpop.f32.mrb[0].mxu0
        %v1759 = vadd.f32 0.0, %v1758
        %v1760 = vpop.f32.mrb[0].mxu0
        %1761 = vmatprep.mubr.f32.mxu0 0.0
        %1762 = vmatmul.mubr.f32.gmra.mrb[0].mxu0 %v326
        %v1763 = vpop.f32.mrb[0].mxu0
        %v1764 = vadd.f32 0.0, %v1763
        %v1765 = vpop.f32.mrb[0].mxu0
        %1766 = vmatprep.mubr.f32.mxu0 0.0
        %1767 = vmatmul.mubr.f32.gmra.mrb[0].mxu0 %v327
        %v1768 = vpop.f32.mrb[0].mxu0
        %v1769 = vadd.f32 0.0, %v1768
        %v1770 = vpop.f32.mrb[0].mxu0
        %1771 = vmatprep.mubr.f32.mxu0 0.0
        %1772 = vmatmul.mubr.f32.gmra.mrb[0].mxu0 %v328
        %v1773 = vpop.f32.mrb[0].mxu0
        %v1774 = vadd.f32 0.0, %v1773
        %v1775 = vpop.f32.mrb[0].mxu0
        %1776 = vdwg.mxu0
        %v1777 = vmul.f32 %v330, %v1538
        %v1778 = vmul.f32 %v332, %v1544
        %v1779 = vmul.f32 %v334, %v1550
        %v1780 = vmul.f32 %v336, %v1556
        %v1781 = vmul.f32 %v338, %v1562
        %v1782 = vmul.f32 %v340, %v1568
        %v1783 = vmul.f32 %v342, %v1574
        %v1784 = vmul.f32 %v344, %v1580
        %v1785 = vmul.f32 %v346, %v1586
        %v1786 = vmul.f32 %v348, %v1592
        %v1787 = vmul.f32 %v350, %v1598
        %v1788 = vmul.f32 %v352, %v1604
        %v1789 = vmul.f32 %v354, %v1610
        %v1790 = vmul.f32 %v356, %v1616
        %v1791 = vmul.f32 %v358, %v1622
        %v1792 = vmul.f32 %v360, %v1628
        %1809 = vrot.lane.b32.xlu0 %v1777, 64
        %v1810 = vpop.permute.xlu0 %1809
        %1811 = vrot.lane.b32.xlu0 %v1778, 64
        %v1812 = vpop.permute.xlu0 %1811
        %1813 = vrot.lane.b32.xlu0 %v1779, 64
        %v1814 = vpop.permute.xlu0 %1813
        %1815 = vrot.lane.b32.xlu0 %v1780, 64
        %v1816 = vpop.permute.xlu0 %1815
        %1817 = vrot.lane.b32.xlu0 %v1781, 64
        %v1818 = vpop.permute.xlu0 %1817
        %1819 = vrot.lane.b32.xlu0 %v1782, 64
        %v1820 = vpop.permute.xlu0 %1819
        %1821 = vrot.lane.b32.xlu0 %v1783, 64
        %v1822 = vpop.permute.xlu0 %1821
        %1823 = vrot.lane.b32.xlu0 %v1784, 64
        %v1824 = vpop.permute.xlu0 %1823
        %1825 = vrot.lane.b32.xlu0 %v1785, 64
        %v1826 = vpop.permute.xlu0 %1825
        %1827 = vrot.lane.b32.xlu0 %v1786, 64
        %v1828 = vpop.permute.xlu0 %1827
        %1829 = vrot.lane.b32.xlu0 %v1787, 64
        %v1830 = vpop.permute.xlu0 %1829
        %1831 = vrot.lane.b32.xlu0 %v1788, 64
        %v1832 = vpop.permute.xlu0 %1831
        %1833 = vrot.lane.b32.xlu0 %v1789, 64
        %v1834 = vpop.permute.xlu0 %1833
        %1835 = vrot.lane.b32.xlu0 %v1790, 64
        %v1836 = vpop.permute.xlu0 %1835
        %1837 = vrot.lane.b32.xlu0 %v1791, 64
        %v1838 = vpop.permute.xlu0 %1837
        %1839 = vrot.lane.b32.xlu0 %v1792, 64
        %v1840 = vpop.permute.xlu0 %1839
        %v1857 = vsub.f32 %v1699, %v1810
        %v1858 = vsub.f32 %v1704, %v1812
        %v1859 = vsub.f32 %v1709, %v1814
        %v1860 = vsub.f32 %v1714, %v1816
        %v1861 = vsub.f32 %v1719, %v1818
        %v1862 = vsub.f32 %v1724, %v1820
        %v1863 = vsub.f32 %v1729, %v1822
        %v1864 = vsub.f32 %v1734, %v1824
        %v1865 = vsub.f32 %v1739, %v1826
        %v1866 = vsub.f32 %v1744, %v1828
        %v1867 = vsub.f32 %v1749, %v1830
        %v1868 = vsub.f32 %v1754, %v1832
        %v1869 = vsub.f32 %v1759, %v1834
        %v1870 = vsub.f32 %v1764, %v1836
        %v1871 = vsub.f32 %v1769, %v1838
        %v1872 = vsub.f32 %v1774, %v1840
        %v1873 = vadd.f32 %v1857, %v1540
        %v1874 = vadd.f32 %v1858, %v1546
        %v1875 = vadd.f32 %v1859, %v1552
        %v1876 = vadd.f32 %v1860, %v1558
        %v1877 = vadd.f32 %v1861, %v1564
        %v1878 = vadd.f32 %v1862, %v1570
        %v1879 = vadd.f32 %v1863, %v1576
        %v1880 = vadd.f32 %v1864, %v1582
        %v1881 = vadd.f32 %v1865, %v1588
        %v1882 = vadd.f32 %v1866, %v1594
        %v1883 = vadd.f32 %v1867, %v1600
        %v1884 = vadd.f32 %v1868, %v1606
        %v1885 = vadd.f32 %v1869, %v1612
        %v1886 = vadd.f32 %v1870, %v1618
        %v1887 = vadd.f32 %v1871, %v1624
        %v1888 = vadd.f32 %v1872, %v1630
        %v1889 = vmax.f32 %v1873, 0.0
        %v1890 = vmax.f32 %v1874, 0.0
        %v1891 = vmax.f32 %v1875, 0.0
        %v1892 = vmax.f32 %v1876, 0.0
        %v1893 = vmax.f32 %v1877, 0.0
        %v1894 = vmax.f32 %v1878, 0.0
        %v1895 = vmax.f32 %v1879, 0.0
        %v1896 = vmax.f32 %v1880, 0.0
        %v1897 = vmax.f32 %v1881, 0.0
        %v1898 = vmax.f32 %v1882, 0.0
        %v1899 = vmax.f32 %v1883, 0.0
        %v1900 = vmax.f32 %v1884, 0.0
        %v1901 = vmax.f32 %v1885, 0.0
        %v1902 = vmax.f32 %v1886, 0.0
        %v1903 = vmax.f32 %v1887, 0.0
        %v1904 = vmax.f32 %v1888, 0.0
        %v1905 = vld [vmem:[%s256] sm:$0xff]
        %1906 = vmatprep.subr.mxu0 0.0
        %1907 = vmatpush1.msra.mxu0 %v1889
        %1908 = vmatprep.subr.mxu0 0.0
        %1909 = vmatpush1.msra.mxu0 %v1890
        %1910 = vmatprep.subr.mxu0 0.0
        %1911 = vmatpush1.msra.mxu0 %v1891
        %1912 = vmatprep.subr.mxu0 0.0
        %1913 = vmatpush1.msra.mxu0 %v1892
        %1914 = vmatprep.subr.mxu0 0.0
        %1915 = vmatpush1.msra.mxu0 %v1893
        %1916 = vmatprep.subr.mxu0 0.0
        %1917 = vmatpush1.msra.mxu0 %v1894
        %1918 = vmatprep.subr.mxu0 0.0
        %1919 = vmatpush1.msra.mxu0 %v1895
        %1920 = vmatprep.subr.mxu0 0.0
        %1921 = vmatpush1.msra.mxu0 %v1896
        %1922 = vmatprep.subr.mxu0 0.0
        %1923 = vmatpush1.msra.mxu0 %v1897
        %1924 = vmatprep.subr.mxu0 0.0
        %1925 = vmatpush1.msra.mxu0 %v1898
        %1926 = vmatprep.subr.mxu0 0.0
        %1927 = vmatpush1.msra.mxu0 %v1899
        %1928 = vmatprep.subr.mxu0 0.0
        %1929 = vmatpush1.msra.mxu0 %v1900
        %1930 = vmatprep.subr.mxu0 0.0
        %1931 = vmatpush1.msra.mxu0 %v1901
        %1932 = vmatprep.subr.mxu0 0.0
        %1933 = vmatpush1.msra.mxu0 %v1902
        %1934 = vmatprep.subr.mxu0 0.0
        %1935 = vmatpush1.msra.mxu0 %v1903
        %1936 = vmatprep.subr.mxu0 0.0
        %1937 = vmatpush1.msra.mxu0 %v1904
        %1938 = vmatprep.subr.mxu0 0.0
        %1939 = vmatpush1.msra.mxu0 0.0
        %1940 = vmatprep.subr.mxu0 0.0
        %1941 = vmatpush1.msra.mxu0 0.0
        %1942 = vmatprep.subr.mxu0 0.0
        %1943 = vmatpush1.msra.mxu0 0.0
        %1944 = vmatprep.subr.mxu0 0.0
        %1945 = vmatpush1.msra.mxu0 0.0
        %1946 = vmatprep.subr.mxu0 0.0
        %1947 = vmatpush1.msra.mxu0 0.0
        %1948 = vmatprep.subr.mxu0 0.0
        %1949 = vmatpush1.msra.mxu0 0.0
        %1950 = vmatprep.subr.mxu0 0.0
        %1951 = vmatpush1.msra.mxu0 0.0
        %1952 = vmatprep.subr.mxu0 0.0
        %1953 = vmatpush1.msra.mxu0 0.0
        %1954 = vmatprep.subr.mxu0 0.0
        %1955 = vmatpush1.msra.mxu0 0.0
        %1956 = vmatprep.subr.mxu0 0.0
        %1957 = vmatpush1.msra.mxu0 0.0
        %1958 = vmatprep.subr.mxu0 0.0
        %1959 = vmatpush1.msra.mxu0 0.0
        %1960 = vmatprep.subr.mxu0 0.0
        %1961 = vmatpush1.msra.mxu0 0.0
        %1962 = vmatprep.subr.mxu0 0.0
        %1963 = vmatpush1.msra.mxu0 0.0
        %1964 = vmatprep.subr.mxu0 0.0
        %1965 = vmatpush1.msra.mxu0 0.0
        %1966 = vmatprep.subr.mxu0 0.0
        %1967 = vmatpush1.msra.mxu0 0.0
        %1968 = vmatprep.subr.mxu0 0.0
        %1969 = vmatpush1.msra.mxu0 0.0
        %1970 = vmatprep.mubr.f32.mxu0 0.0
        %1971 = vmatmul.mubr.f32.gmra.mrb[0].mxu0 %v1905
        %v1972 = vpop.f32.mrb[0].mxu0
        %v1973 = vadd.f32 0.0, %v1972
        %v1974 = vpop.f32.mrb[0].mxu0
        %1975 = vdwg.mxu0
        %v1976 = vld [vmem:[#allocation7] sm:$0xff]
        %v1977 = vld [vmem:[#allocation7 + $0x8] sm:$0xff]
        %v1978 = vld [vmem:[#allocation7 + $0x10] sm:$0xff]
        %v1979 = vld [vmem:[#allocation7 + $0x18] sm:$0xff]
        %v1980 = vld [vmem:[#allocation7 + $0x20] sm:$0xff]
        %v1981 = vld [vmem:[#allocation7 + $0x28] sm:$0xff]
        %v1982 = vld [vmem:[#allocation7 + $0x30] sm:$0xff]
        %v1983 = vld [vmem:[#allocation7 + $0x38] sm:$0xff]
        %v1984 = vld [vmem:[#allocation7 + $0xc0] sm:$0x1]
        %v1985 = vld [vmem:[#allocation7 + $0x40] sm:$0xff]
        %v1986 = vld [vmem:[#allocation7 + $0x48] sm:$0xff]
        %v1987 = vld [vmem:[#allocation7 + $0x50] sm:$0xff]
        %v1988 = vld [vmem:[#allocation7 + $0x58] sm:$0xff]
        %v1989 = vld [vmem:[#allocation7 + $0x60] sm:$0xff]
        %v1990 = vld [vmem:[#allocation7 + $0x68] sm:$0xff]
        %v1991 = vld [vmem:[#allocation7 + $0x70] sm:$0xff]
        %v1992 = vld [vmem:[#allocation7 + $0x78] sm:$0xff]
        %v1993 = vld [vmem:[#allocation7 + $0x80] sm:$0xff]
        %v1994 = vld [vmem:[#allocation7 + $0x88] sm:$0xff]
        %v1995 = vld [vmem:[#allocation7 + $0x90] sm:$0xff]
        %v1996 = vld [vmem:[#allocation7 + $0x98] sm:$0xff]
        %v1997 = vld [vmem:[#allocation7 + $0xa0] sm:$0xff]
        %v1998 = vld [vmem:[#allocation7 + $0xa8] sm:$0xff]
        %v1999 = vld [vmem:[#allocation7 + $0xb0] sm:$0xff]
        %v2000 = vld [vmem:[#allocation7 + $0xb8] sm:$0xff]
        %v2001 = vld [vmem:[#allocation7 + $0xc8] sm:$0x1]
        %v2002 = vlaneseq
        %v2003 = vshrl.u32 %v2002, 7
        %v2004 = vsub.s32 0, %v2003
        %v2005 = vrot.slane %v1984, %v2004
        %v2007 = vsel %vm911, %v1973, 0
        %2009 = vmatprep.subr.mxu0 0.0
        %2010 = vmatpush1.msra.mxu0 %v1976
        %2011 = vmatprep.subr.mxu0 0.0
        %2012 = vmatpush1.msra.mxu0 %v1977
        %2013 = vmatprep.subr.mxu0 0.0
        %2014 = vmatpush1.msra.mxu0 %v1978
        %2015 = vmatprep.subr.mxu0 0.0
        %2016 = vmatpush1.msra.mxu0 %v1979
        %2017 = vmatprep.subr.mxu0 0.0
        %2018 = vmatpush1.msra.mxu0 %v1980
        %2019 = vmatprep.subr.mxu0 0.0
        %2020 = vmatpush1.msra.mxu0 %v1981
        %2021 = vmatprep.subr.mxu0 0.0
        %2022 = vmatpush1.msra.mxu0 %v1982
        %2023 = vmatprep.subr.mxu0 0.0
        %2024 = vmatpush1.msra.mxu0 %v1983
        %2025 = vmatprep.subr.mxu0 0.0
        %2026 = vmatpush1.msra.mxu0 0.0
        %2027 = vmatprep.subr.mxu0 0.0
        %2028 = vmatpush1.msra.mxu0 0.0
        %2029 = vmatprep.subr.mxu0 0.0
        %2030 = vmatpush1.msra.mxu0 0.0
        %2031 = vmatprep.subr.mxu0 0.0
        %2032 = vmatpush1.msra.mxu0 0.0
        %2033 = vmatprep.subr.mxu0 0.0
        %2034 = vmatpush1.msra.mxu0 0.0
        %2035 = vmatprep.subr.mxu0 0.0
        %2036 = vmatpush1.msra.mxu0 0.0
        %2037 = vmatprep.subr.mxu0 0.0
        %2038 = vmatpush1.msra.mxu0 0.0
        %2039 = vmatprep.subr.mxu0 0.0
        %2040 = vmatpush1.msra.mxu0 0.0
        %2041 = vmatprep.subr.mxu0 0.0
        %2042 = vmatpush1.msra.mxu0 0.0
        %2043 = vmatprep.subr.mxu0 0.0
        %2044 = vmatpush1.msra.mxu0 0.0
        %2045 = vmatprep.subr.mxu0 0.0
        %2046 = vmatpush1.msra.mxu0 0.0
        %2047 = vmatprep.subr.mxu0 0.0
        %2048 = vmatpush1.msra.mxu0 0.0
        %2049 = vmatprep.subr.mxu0 0.0
        %2050 = vmatpush1.msra.mxu0 0.0
        %2051 = vmatprep.subr.mxu0 0.0
        %2052 = vmatpush1.msra.mxu0 0.0
        %2053 = vmatprep.subr.mxu0 0.0
        %2054 = vmatpush1.msra.mxu0 0.0
        %2055 = vmatprep.subr.mxu0 0.0
        %2056 = vmatpush1.msra.mxu0 0.0
        %2057 = vmatprep.subr.mxu0 0.0
        %2058 = vmatpush1.msra.mxu0 0.0
        %2059 = vmatprep.subr.mxu0 0.0
        %2060 = vmatpush1.msra.mxu0 0.0
        %2061 = vmatprep.subr.mxu0 0.0
        %2062 = vmatpush1.msra.mxu0 0.0
        %2063 = vmatprep.subr.mxu0 0.0
        %2064 = vmatpush1.msra.mxu0 0.0
        %2065 = vmatprep.subr.mxu0 0.0
        %2066 = vmatpush1.msra.mxu0 0.0
        %2067 = vmatprep.subr.mxu0 0.0
        %2068 = vmatpush1.msra.mxu0 0.0
        %2069 = vmatprep.subr.mxu0 0.0
        %2070 = vmatpush1.msra.mxu0 0.0
        %2071 = vmatprep.subr.mxu0 0.0
        %2072 = vmatpush1.msra.mxu0 0.0
        %2073 = vmatprep.mubr.f32.mxu0 0.0
        %2074 = vmatmul.mubr.f32.gmra.mrb[0].mxu0 %v2007
        %v2075 = vpop.f32.mrb[0].mxu0
        %v2076 = vadd.f32 %v2005, %v2075
        %v2077 = vpop.f32.mrb[0].mxu0
        %2078 = vdwg.mxu0
        %v2079 = vmax.f32 %v2076, 0.0
        %v2080 = vlaneseq
        %v2081 = vshrl.u32 %v2080, 7
        %v2082 = vsub.s32 0, %v2081
        %v2083 = vrot.slane %v2001, %v2082
        %2084 = vmatprep.subr.mxu0 0.0
        %2085 = vmatpush1.msra.mxu0 %v1985
        %2086 = vmatprep.subr.mxu0 0.0
        %2087 = vmatpush1.msra.mxu0 %v1986
        %2088 = vmatprep.subr.mxu0 0.0
        %2089 = vmatpush1.msra.mxu0 %v1987
        %2090 = vmatprep.subr.mxu0 0.0
        %2091 = vmatpush1.msra.mxu0 %v1988
        %2092 = vmatprep.subr.mxu0 0.0
        %2093 = vmatpush1.msra.mxu0 %v1989
        %2094 = vmatprep.subr.mxu0 0.0
        %2095 = vmatpush1.msra.mxu0 %v1990
        %2096 = vmatprep.subr.mxu0 0.0
        %2097 = vmatpush1.msra.mxu0 %v1991
        %2098 = vmatprep.subr.mxu0 0.0
        %2099 = vmatpush1.msra.mxu0 %v1992
        %2100 = vmatprep.subr.mxu0 0.0
        %2101 = vmatpush1.msra.mxu0 %v1993
        %2102 = vmatprep.subr.mxu0 0.0
        %2103 = vmatpush1.msra.mxu0 %v1994
        %2104 = vmatprep.subr.mxu0 0.0
        %2105 = vmatpush1.msra.mxu0 %v1995
        %2106 = vmatprep.subr.mxu0 0.0
        %2107 = vmatpush1.msra.mxu0 %v1996
        %2108 = vmatprep.subr.mxu0 0.0
        %2109 = vmatpush1.msra.mxu0 %v1997
        %2110 = vmatprep.subr.mxu0 0.0
        %2111 = vmatpush1.msra.mxu0 %v1998
        %2112 = vmatprep.subr.mxu0 0.0
        %2113 = vmatpush1.msra.mxu0 %v1999
        %2114 = vmatprep.subr.mxu0 0.0
        %2115 = vmatpush1.msra.mxu0 %v2000
        %2116 = vmatprep.subr.mxu0 0.0
        %2117 = vmatpush1.msra.mxu0 0.0
        %2118 = vmatprep.subr.mxu0 0.0
        %2119 = vmatpush1.msra.mxu0 0.0
        %2120 = vmatprep.subr.mxu0 0.0
        %2121 = vmatpush1.msra.mxu0 0.0
        %2122 = vmatprep.subr.mxu0 0.0
        %2123 = vmatpush1.msra.mxu0 0.0
        %2124 = vmatprep.subr.mxu0 0.0
        %2125 = vmatpush1.msra.mxu0 0.0
        %2126 = vmatprep.subr.mxu0 0.0
        %2127 = vmatpush1.msra.mxu0 0.0
        %2128 = vmatprep.subr.mxu0 0.0
        %2129 = vmatpush1.msra.mxu0 0.0
        %2130 = vmatprep.subr.mxu0 0.0
        %2131 = vmatpush1.msra.mxu0 0.0
        %2132 = vmatprep.subr.mxu0 0.0
        %2133 = vmatpush1.msra.mxu0 0.0
        %2134 = vmatprep.subr.mxu0 0.0
        %2135 = vmatpush1.msra.mxu0 0.0
        %2136 = vmatprep.subr.mxu0 0.0
        %2137 = vmatpush1.msra.mxu0 0.0
        %2138 = vmatprep.subr.mxu0 0.0
        %2139 = vmatpush1.msra.mxu0 0.0
        %2140 = vmatprep.subr.mxu0 0.0
        %2141 = vmatpush1.msra.mxu0 0.0
        %2142 = vmatprep.subr.mxu0 0.0
        %2143 = vmatpush1.msra.mxu0 0.0
        %2144 = vmatprep.subr.mxu0 0.0
        %2145 = vmatpush1.msra.mxu0 0.0
        %2146 = vmatprep.subr.mxu0 0.0
        %2147 = vmatpush1.msra.mxu0 0.0
        %2148 = vmatprep.mubr.f32.mxu0 0.0
        %2149 = vmatmul.mubr.f32.gmra.mrb[0].mxu0 %v2079
        %v2150 = vpop.f32.mrb[0].mxu0
        %v2151 = vadd.f32 %v2083, %v2150
        %v2152 = vpop.f32.mrb[0].mxu0
        %2153 = vdwg.mxu0
        %2154 = vst [vmem:[%s300] sm:$0xff] %v2151
        %s2155 = sand.u32 %s151, 1
        %s2156 = scalar_lea.sflag [#allocation4], %s2155
        %s2157 = sand.u32 %s151, 1
        %s2158 = smul.addr %s2157, 8
        %s2159 = scalar_lea.vmem [#allocation8], %s2158
        // Predicated region
        $region53: #{tpu_custom_call.1} parent=39 // pred_check
          %p2160 = pneg %p161
        $region54: #{tpu_custom_call.1} parent=39 // pred_check_branch
          %2162 = sbr.rel (%p2160) target = $region56
        $region55: #{tpu_custom_call.1} parent=39 // pred_region
          %s2164 = ssub.s32 128, 128
          %2165 = vsyncadd %s2156, %s2164
          %s2166 = smul.addr %s23, 128
          %s2167 = scalar_lea.hbm %s5, %s2166
          %s2169 = sshll.u32 %s2159, 4
          %s2170 = int_to_ptr.vmem [resolvable:$true] %s2169
          %2172 = dma.vmem_to_hbm [thread:$0]  %s2170, 128, %s2167, %s2156
        $region56: #{tpu_custom_call.1} parent=39 // pred_fallthru
          _
      $region40: #{tpu_custom_call.1} parent=5 // pred_fallthru
        _
      %p2173 = scmp.le.s32.totalorder 2, %s18
      // Predicated region
      $region57: #{tpu_custom_call.1} parent=5 // pred_check
        %p2174 = pneg %p2173
      $region58: #{tpu_custom_call.1} parent=5 // pred_check_branch
        %2176 = sbr.rel (%p2174) target = $region60
      $region59: #{tpu_custom_call.1} parent=5 // pred_region
        %s2177 = ssub.s32 %s18, 2
        // Predicated region
        $region61: #{tpu_custom_call.1} parent=59 // pred_check
          %p2178 = pneg %p167
        $region62: #{tpu_custom_call.1} parent=59 // pred_check_branch
          %2180 = sbr.rel (%p2178) target = $region64
        $region63: #{tpu_custom_call.1} parent=59 // pred_region
          %s2181 = sand.u32 %s152, 1
          %s2182 = scalar_lea.sflag [#allocation4], %s2181
          %s2183 = sand.u32 %s152, 1
          %s2184 = smul.addr %s2183, 8
          %s2185 = scalar_lea.vmem [#allocation8], %s2184
          %2186 = dma.done %s2182, 128
        $region64: #{tpu_custom_call.1} parent=59 // pred_fallthru
          _
      $region60: #{tpu_custom_call.1} parent=5 // pred_fallthru
        _
    $region6: #{tpu_custom_call.1} parent=1 // loop_footer
      %s22 = sadd.s32 1, %s18
    $region7: #{tpu_custom_call.1} parent=1 // loop_footer_branch
      %17 = sbr.rel target = $region3
    $region8: #{tpu_custom_call.1} parent=1 // loop_exit
      _
    %2187 = vsyncpa [#allocation3], 1
    %s2188 = scalar_lea.sflag [#allocation3], 1
    %2189 = vsyncpa %s2188, 1
    %2190 = vsyncpa [#allocation6], 1
    %2191 = vsyncpa [#allocation4], 1
    %s2192 = scalar_lea.sflag [#allocation4], 1
    %2193 = vsyncpa %s2192, 1

</llo_original>
